<compile_context>
chip_gen: v6e
topology: v6e:2x2x1
jax: 0.10.0
libtpu: 0.0.40
codegen_flags: <defaults>
</compile_context>

<pallas_src>
import numpy as np
import jax
import jax.numpy as jnp
from jax.experimental import pallas as pl
from jax.experimental.pallas import tpu as pltpu

BB_MAX = 64      # max images per grid step (sublane-aligned)
WIN = 32         # input width padded 28 -> 32
HPAD = 36        # input height padded 28 -> 36 (room for padded conv1 rows)
C1P = 8          # conv1 out-channels padded 6 -> 8 (lane block per pooled col)
C2 = 16          # conv2 out-channels
N1 = 12 * C1P    # 96  = conv1 pooled-cols x channels lanes
N2 = 4 * C2      # 64  = conv2 pooled-cols x channels lanes


# ---------------------------------------------------------------------------
# Fused kernel (built per batch-block size bb)
# ---------------------------------------------------------------------------

def _make_kernel(bb):
    f32, bf16 = jnp.float32, jnp.bfloat16

    def kernel(x_ref, t1_ref, t2_ref, wf1_ref, wf2_ref, wf3_ref,
               b1_ref, b2_ref, bf1_ref, bf2_ref, bf3_ref,
               out_ref, s2_ref):
        # ---- conv1 (1->6ch, 5x5, valid) + 2x2 max-pool ----------------------
        # Input is row-pair folded: x_ref[b, p, u*32 + w] = img[b, 2p+u, w].
        # One matmul per conv-output-row parity h; 5 H-taps are K-stacked via a
        # lane concat; W-pool = max of the two N-phases of t1; H-pool = max of
        # the two parity results.  NOTE: bias is shared by all pooled phases
        # and ReLU is monotone, so (max -> +bias -> ReLU) == maxpool(relu(conv+b)).
        xb = x_ref[...].astype(bf16)                       # (bb, 18, 64), cast once
        wv = []
        for h in range(2):                                 # conv-row parity
            chunks = []
            for i in range(5):                             # kernel row (H tap)
                d, q = (h + i) // 2, (h + i) % 2
                chunks.append(xb[:, d:d + 16, q * 32:(q + 1) * 32])
            s = jnp.concatenate(chunks, axis=-1)           # (bb, 16, 160)
            r = jnp.dot(s.reshape(bb * 16, 5 * WIN), t1_ref[...],
                        preferred_element_type=f32)        # (bb*16, 192)
            wv.append(jnp.maximum(r[:, :N1], r[:, N1:]))   # max-pool over W
        p1 = jnp.maximum(wv[0], wv[1])                     # max-pool over H
        p1 = jnp.maximum(p1 + b1_ref[...], 0.0)            # bias + ReLU (f32)
        # rows m=12..15 per image are padding garbage and are never read below.

        # ---- conv2 (6->16ch, 5x5, valid) + W-direction of the 2x2 pool -------
        p1b = p1.astype(bf16).reshape(bb, 16, N1)          # cast once
        s2 = jnp.concatenate([p1b[:, i:i + 8, :] for i in range(5)], axis=-1)
        r2 = jnp.dot(s2.reshape(bb * 8, 5 * N1), t2_ref[...],
                     preferred_element_type=f32)           # (bb*8, 128)
        v2 = jnp.maximum(r2[:, :N2], r2[:, N2:])           # max-pool over W
        v2 = jnp.maximum(v2 + b2_ref[...], 0.0)            # bias + ReLU
        s2_ref[...] = v2.reshape(bb, 8, N2)

        # ---- H-pool of conv2 + NCHW flatten (single lane concat) -------------
        f = jnp.concatenate(
            [jnp.maximum(s2_ref[:, 2 * r, :], s2_ref[:, 2 * r + 1, :])
             for r in range(4)], axis=-1).reshape(bb, 4 * N2)   # (bb, 256)

        # ---- fc1 (256->120) / fc2 (120->84) / fc3 (84->62), 128-lane padded --
        h1 = jnp.dot(f.astype(bf16), wf1_ref[...], preferred_element_type=f32)
        h1 = jnp.maximum(h1 + bf1_ref[...], 0.0)
        h2 = jnp.dot(h1.astype(bf16), wf2_ref[...], preferred_element_type=f32)
        h2 = jnp.maximum(h2 + bf2_ref[...], 0.0)
        h3 = jnp.dot(h2.astype(bf16), wf3_ref[...], preferred_element_type=f32)
        out_ref[...] = h3 + bf3_ref[...]

    return kernel


# ---------------------------------------------------------------------------
# Parameters (PyTorch-style init) and host-side weight packing
# ---------------------------------------------------------------------------

def _uniform(key, shape, fan_in):
    bound = 1.0 / np.sqrt(fan_in)
    return jax.random.uniform(key, shape, jnp.float32, -bound, bound)


def init_params(key):
    ks = jax.random.split(key, 10)
    return {
        "w1": _uniform(ks[0], (6, 1, 5, 5), 25),   "b1": _uniform(ks[1], (6,), 25),
        "w2": _uniform(ks[2], (16, 6, 5, 5), 150), "b2": _uniform(ks[3], (16,), 150),
        "wf1": _uniform(ks[4], (120, 256), 256),   "bf1": _uniform(ks[5], (120,), 256),
        "wf2": _uniform(ks[6], (84, 120), 120),    "bf2": _uniform(ks[7], (84,), 120),
        "wf3": _uniform(ks[8], (62, 84), 84),      "bf3": _uniform(ks[9], (62,), 84),
    }


def pack_params(params):
    """Pre-pack PyTorch-layout weights into MXU / lane-friendly matrices."""
    w1 = np.asarray(params["w1"], np.float32)
    b1 = np.asarray(params["b1"], np.float32)
    w2 = np.asarray(params["w2"], np.float32)
    b2 = np.asarray(params["b2"], np.float32)
    wf1 = np.asarray(params["wf1"], np.float32)
    bf1 = np.asarray(params["bf1"], np.float32)
    wf2 = np.asarray(params["wf2"], np.float32)
    bf2 = np.asarray(params["bf2"], np.float32)
    wf3 = np.asarray(params["wf3"], np.float32)
    bf3 = np.asarray(params["bf3"], np.float32)

    # conv1: K = 5 H-taps x 32 cols (K-stacked), N = [even|odd W-phase] x 12
    # pooled cols x 8 (6 real) channels.  t1[i*32 + 2k(+1) + j, phase*96 + k*8 + c]
    t1 = np.zeros((5 * WIN, 2 * N1), np.float32)
    for i in range(5):
        for k in range(12):
            for j in range(5):
                t1[i * WIN + 2 * k + j, k * C1P:k * C1P + 6] = w1[:, 0, i, j]
                t1[i * WIN + 2 * k + 1 + j,
                   N1 + k * C1P:N1 + k * C1P + 6] = w1[:, 0, i, j]
    b1t = np.zeros((1, N1), np.float32)
    for k in range(12):
        b1t[0, k * C1P:k * C1P + 6] = b1

    # conv2: K = 5 H-taps x (12 pooled cols x 8 ch), N = [even|odd] x 4 x 16.
    t2 = np.zeros((5 * N1, 2 * N2), np.float32)
    for i in range(5):
        for k in range(4):
            for j in range(5):
                for c in range(6):
                    t2[i * N1 + (2 * k + j) * C1P + c,
                       k * C2:(k + 1) * C2] = w2[:, c, i, j]
                    t2[i * N1 + (2 * k + 1 + j) * C1P + c,
                       N2 + k * C2:N2 + (k + 1) * C2] = w2[:, c, i, j]
    b2t = np.zeros((1, N2), np.float32)
    for k in range(4):
        b2t[0, k * C2:(k + 1) * C2] = b2

    # fc1: kernel flattens pool2 as lane = r*64 + k*16 + oc; the PyTorch NCHW
    # flatten index is oc*16 + r*4 + k.  Single (256,128) matrix.
    wf1p = np.zeros((4 * N2, 128), np.float32)
    for r in range(4):
        for k in range(4):
            for oc in range(C2):
                wf1p[r * N2 + k * C2 + oc, :120] = wf1[:, oc * 16 + r * 4 + k]
    bf1p = np.zeros((1, 128), np.float32); bf1p[0, :120] = bf1

    wf2p = np.zeros((128, 128), np.float32); wf2p[:120, :84] = wf2.T
    bf2p = np.zeros((1, 128), np.float32);   bf2p[0, :84] = bf2
    wf3p = np.zeros((128, 128), np.float32); wf3p[:84, :62] = wf3.T
    bf3p = np.zeros((1, 128), np.float32);   bf3p[0, :62] = bf3

    bf = jnp.bfloat16
    return {
        "t1": jnp.asarray(t1, bf), "t2": jnp.asarray(t2, bf),
        "wf1": jnp.asarray(wf1p, bf), "wf2": jnp.asarray(wf2p, bf),
        "wf3": jnp.asarray(wf3p, bf),
        "b1": jnp.asarray(b1t), "b2": jnp.asarray(b2t),
        "bf1": jnp.asarray(bf1p), "bf2": jnp.asarray(bf2p),
        "bf3": jnp.asarray(bf3p),
    }


# ---------------------------------------------------------------------------
# Forward pass wrapper (single pallas_call, batch grid)
# ---------------------------------------------------------------------------

def _pick_bb(batch):
    """Largest block <= BB_MAX, preferring >=2 grid steps (v7x megacore)."""
    bb = BB_MAX
    while bb > 8 and (batch + bb - 1) // bb < 2:
        bb //= 2
    return bb


@jax.jit
def lenet_forward(packed, x):
    """x: (B, 1, 28, 28) float32 -> (B, 62) float32 logits."""
    B = x.shape[0]
    bb = _pick_bb(B)
    nb = (B + bb - 1) // bb
    bp = nb * bb

    xs = jnp.squeeze(x, axis=1)                                      # (B, 28, 28)
    xs = jnp.pad(xs, ((0, bp - B), (0, HPAD - 28), (0, WIN - 28)))   # (bp, 36, 32)
    # Fold row pairs into lanes (free row-major reshape): [b, p, u*32+w] = img[b,2p+u,w]
    xs = xs.reshape(bp, HPAD // 2, 2 * WIN)                          # (bp, 18, 64)

    def const_spec(arr):
        nd = arr.ndim
        return pl.BlockSpec(arr.shape, lambda i, _nd=nd: (0,) * _nd)

    grid_spec = pltpu.PrefetchScalarGridSpec(
        num_scalar_prefetch=0,
        grid=(nb,),
        in_specs=[
            pl.BlockSpec((bb, HPAD // 2, 2 * WIN), lambda i: (i, 0, 0)),
            const_spec(packed["t1"]), const_spec(packed["t2"]),
            const_spec(packed["wf1"]), const_spec(packed["wf2"]),
            const_spec(packed["wf3"]),
            const_spec(packed["b1"]), const_spec(packed["b2"]),
            const_spec(packed["bf1"]), const_spec(packed["bf2"]),
            const_spec(packed["bf3"]),
        ],
        out_specs=pl.BlockSpec((bb, 128), lambda i: (i, 0)),
        scratch_shapes=[pltpu.VMEM((bb, 8, N2), jnp.float32)],   # conv2 pre H-pool
    )

    flops_per_img = 2 * (6 * 24 * 24 * 25 + 16 * 8 * 8 * 150
                         + 256 * 120 + 120 * 84 + 84 * 62)
    weight_bytes = sum(int(np.prod(v.shape)) * v.dtype.itemsize
                       for v in packed.values())
    cost = pl.CostEstimate(
        flops=int(bp) * flops_per_img,
        transcendentals=0,
        bytes_accessed=int(bp) * ((HPAD // 2) * 2 * WIN * 4 + 128 * 4)
                       + int(weight_bytes),
    )

    out = pl.pallas_call(
        _make_kernel(bb),
        out_shape=jax.ShapeDtypeStruct((bp, 128), jnp.float32),
        grid_spec=grid_spec,
        compiler_params=pltpu.CompilerParams(
            dimension_semantics=("parallel",)),
        cost_estimate=cost,
    )(xs, packed["t1"], packed["t2"], packed["wf1"], packed["wf2"],
      packed["wf3"], packed["b1"], packed["b2"], packed["bf1"],
      packed["bf2"], packed["bf3"])
    # Batch-padding rows produce garbage logits; slice them (and lane pad) off.
    return out[:B, :62]


# ---------------------------------------------------------------------------
# Pure-JAX reference (mirrors the PyTorch module, f32)
# ---------------------------------------------------------------------------

def lenet_reference(params, x):
    dn = ("NCHW", "OIHW", "NCHW")
    y = jax.lax.conv_general_dilated(x, params["w1"], (1, 1), "VALID",
                                     dimension_numbers=dn)
    y = jnp.maximum(y + params["b1"][None, :, None, None], 0.0)
    y = jax.lax.reduce_window(y, -jnp.inf, jax.lax.max,
                              (1, 1, 2, 2), (1, 1, 2, 2), "VALID")
    y = jax.lax.conv_general_dilated(y, params["w2"], (1, 1), "VALID",
                                     dimension_numbers=dn)
    y = jnp.maximum(y + params["b2"][None, :, None, None], 0.0)
    y = jax.lax.reduce_window(y, -jnp.inf, jax.lax.max,
                              (1, 1, 2, 2), (1, 1, 2, 2), "VALID")
    y = y.reshape(y.shape[0], -1)
    y = jnp.maximum(y @ params["wf1"].T + params["bf1"], 0.0)
    y = jnp.maximum(y @ params["wf2"].T + params["bf2"], 0.0)
    return y @ params["wf3"].T + params["bf3"]


if __name__ == "__main__":
    key = jax.random.PRNGKey(0)
    k_param, k_in1, k_in2 = jax.random.split(key, 3)

    params = init_params(k_param)
    packed = pack_params(params)

    # Small batch: bb=8, grid of 2 steps.
    x = jax.random.normal(k_in1, (16, 1, 28, 28), dtype=jnp.float32)
    out = lenet_forward(packed, x)
    jax.block_until_ready(out)
    assert out.shape == (16, 62), out.shape
    assert out.dtype == jnp.float32

    ref = lenet_reference(params, x)
    # bf16 matmul operands (f32 accumulation) vs the f32 reference: loose
    # absolute tolerance on logits -- fine for inference.
    err = float(jnp.max(jnp.abs(out - ref)))
    assert err < 0.3, f"max abs err vs reference (B=16): {err}"

    # Large batch: bb=64, 2 grid steps, exercises batch padding (100 -> 128).
    x2 = jax.random.normal(k_in2, (100, 1, 28, 28), dtype=jnp.float32)
    out2 = lenet_forward(packed, x2)
    jax.block_until_ready(out2)
    assert out2.shape == (100, 62), out2.shape
    ref2 = lenet_reference(params, x2)
    err2 = float(jnp.max(jnp.abs(out2 - ref2)))
    assert err2 < 0.3, f"max abs err vs reference (B=100): {err2}"

    print("KERNEL_OK")
</pallas_src>

<mosaic_0001>
module attributes {stable_mosaic.version = 11 : i64} {
  func.func @kernel(%arg0: i32, %arg1: memref<8x18x64xf32, #tpu.memory_space<vmem>>, %arg2: memref<160x192xbf16, #tpu.memory_space<vmem>>, %arg3: memref<480x128xbf16, #tpu.memory_space<vmem>>, %arg4: memref<256x128xbf16, #tpu.memory_space<vmem>>, %arg5: memref<128x128xbf16, #tpu.memory_space<vmem>>, %arg6: memref<128x128xbf16, #tpu.memory_space<vmem>>, %arg7: memref<1x96xf32, #tpu.memory_space<vmem>>, %arg8: memref<1x64xf32, #tpu.memory_space<vmem>>, %arg9: memref<1x128xf32, #tpu.memory_space<vmem>>, %arg10: memref<1x128xf32, #tpu.memory_space<vmem>>, %arg11: memref<1x128xf32, #tpu.memory_space<vmem>>, %arg12: memref<8x128xf32, #tpu.memory_space<vmem>>, %arg13: memref<8x8x64xf32, #tpu.memory_space<vmem>>) attributes {dimension_semantics = [#tpu.dimension_semantics<parallel>], iteration_bounds = array<i64: 2>, scalar_prefetch = 0 : i64, scratch_operands = 1 : i64, tpu.core_type = #tpu.core_type<tc>, window_params = [{transform_indices = @transform_0, window_bounds = array<i64: 8, 18, 64>}, {pipeline_mode = #tpu.pipeline_mode<synchronous>, transform_indices = @transform_1, window_bounds = array<i64: 160, 192>}, {pipeline_mode = #tpu.pipeline_mode<synchronous>, transform_indices = @transform_2, window_bounds = array<i64: 480, 128>}, {pipeline_mode = #tpu.pipeline_mode<synchronous>, transform_indices = @transform_3, window_bounds = array<i64: 256, 128>}, {pipeline_mode = #tpu.pipeline_mode<synchronous>, transform_indices = @transform_4, window_bounds = array<i64: 128, 128>}, {pipeline_mode = #tpu.pipeline_mode<synchronous>, transform_indices = @transform_5, window_bounds = array<i64: 128, 128>}, {pipeline_mode = #tpu.pipeline_mode<synchronous>, transform_indices = @transform_6, window_bounds = array<i64: 1, 96>}, {pipeline_mode = #tpu.pipeline_mode<synchronous>, transform_indices = @transform_7, window_bounds = array<i64: 1, 64>}, {pipeline_mode = #tpu.pipeline_mode<synchronous>, transform_indices = @transform_8, window_bounds = array<i64: 1, 128>}, {pipeline_mode = #tpu.pipeline_mode<synchronous>, transform_indices = @transform_9, window_bounds = array<i64: 1, 128>}, {pipeline_mode = #tpu.pipeline_mode<synchronous>, transform_indices = @transform_10, window_bounds = array<i64: 1, 128>}, {transform_indices = @transform_11, window_bounds = array<i64: 8, 128>}]} {
    %c0 = arith.constant 0 : index
    %c0_0 = arith.constant 0 : index
    %c0_1 = arith.constant 0 : index
    %0 = vector.load %arg1[%c0, %c0_0, %c0_1] : memref<8x18x64xf32, #tpu.memory_space<vmem>>, vector<8x18x64xf32>
    %1 = arith.truncf %0 : vector<8x18x64xf32> to vector<8x18x64xbf16>
    %2 = vector.extract_strided_slice %1 {offsets = [0, 0, 0], sizes = [8, 16, 32], strides = [1, 1, 1]} : vector<8x18x64xbf16> to vector<8x16x32xbf16>
    %3 = vector.extract_strided_slice %1 {offsets = [0, 0, 32], sizes = [8, 16, 32], strides = [1, 1, 1]} : vector<8x18x64xbf16> to vector<8x16x32xbf16>
    %4 = vector.extract_strided_slice %1 {offsets = [0, 1, 0], sizes = [8, 16, 32], strides = [1, 1, 1]} : vector<8x18x64xbf16> to vector<8x16x32xbf16>
    %5 = vector.extract_strided_slice %1 {offsets = [0, 1, 32], sizes = [8, 16, 32], strides = [1, 1, 1]} : vector<8x18x64xbf16> to vector<8x16x32xbf16>
    %6 = vector.extract_strided_slice %1 {offsets = [0, 2, 0], sizes = [8, 16, 32], strides = [1, 1, 1]} : vector<8x18x64xbf16> to vector<8x16x32xbf16>
    %7 = tpu.concatenate %2, %3, %4, %5, %6 in 2 : vector<8x16x32xbf16>, vector<8x16x32xbf16>, vector<8x16x32xbf16>, vector<8x16x32xbf16>, vector<8x16x32xbf16> -> vector<8x16x160xbf16>
    %8 = vector.shape_cast %7 : vector<8x16x160xbf16> to vector<128x160xbf16>
    %c0_2 = arith.constant 0 : index
    %c0_3 = arith.constant 0 : index
    %9 = vector.load %arg2[%c0_2, %c0_3] : memref<160x192xbf16, #tpu.memory_space<vmem>>, vector<160x192xbf16>
    %cst = arith.constant dense<0.000000e+00> : vector<128x192xf32>
    %10 = tpu.matmul %8, %9, %cst {dimension_numbers = #tpu.dot_dimension_numbers<[1], [0], [0], [1], [0, 0, 1, 1], [], []>} : vector<128x160xbf16>, vector<160x192xbf16>, vector<128x192xf32> -> vector<128x192xf32>
    %11 = vector.extract_strided_slice %10 {offsets = [0, 0], sizes = [128, 96], strides = [1, 1]} : vector<128x192xf32> to vector<128x96xf32>
    %12 = vector.extract_strided_slice %10 {offsets = [0, 96], sizes = [128, 96], strides = [1, 1]} : vector<128x192xf32> to vector<128x96xf32>
    %13 = arith.maximumf %11, %12 : vector<128x96xf32>
    %14 = vector.extract_strided_slice %1 {offsets = [0, 0, 32], sizes = [8, 16, 32], strides = [1, 1, 1]} : vector<8x18x64xbf16> to vector<8x16x32xbf16>
    %15 = vector.extract_strided_slice %1 {offsets = [0, 1, 0], sizes = [8, 16, 32], strides = [1, 1, 1]} : vector<8x18x64xbf16> to vector<8x16x32xbf16>
    %16 = vector.extract_strided_slice %1 {offsets = [0, 1, 32], sizes = [8, 16, 32], strides = [1, 1, 1]} : vector<8x18x64xbf16> to vector<8x16x32xbf16>
    %17 = vector.extract_strided_slice %1 {offsets = [0, 2, 0], sizes = [8, 16, 32], strides = [1, 1, 1]} : vector<8x18x64xbf16> to vector<8x16x32xbf16>
    %18 = vector.extract_strided_slice %1 {offsets = [0, 2, 32], sizes = [8, 16, 32], strides = [1, 1, 1]} : vector<8x18x64xbf16> to vector<8x16x32xbf16>
    %19 = tpu.concatenate %14, %15, %16, %17, %18 in 2 : vector<8x16x32xbf16>, vector<8x16x32xbf16>, vector<8x16x32xbf16>, vector<8x16x32xbf16>, vector<8x16x32xbf16> -> vector<8x16x160xbf16>
    %20 = vector.shape_cast %19 : vector<8x16x160xbf16> to vector<128x160xbf16>
    %c0_4 = arith.constant 0 : index
    %c0_5 = arith.constant 0 : index
    %21 = vector.load %arg2[%c0_4, %c0_5] : memref<160x192xbf16, #tpu.memory_space<vmem>>, vector<160x192xbf16>
    %cst_6 = arith.constant dense<0.000000e+00> : vector<128x192xf32>
    %22 = tpu.matmul %20, %21, %cst_6 {dimension_numbers = #tpu.dot_dimension_numbers<[1], [0], [0], [1], [0, 0, 1, 1], [], []>} : vector<128x160xbf16>, vector<160x192xbf16>, vector<128x192xf32> -> vector<128x192xf32>
    %23 = vector.extract_strided_slice %22 {offsets = [0, 0], sizes = [128, 96], strides = [1, 1]} : vector<128x192xf32> to vector<128x96xf32>
    %24 = vector.extract_strided_slice %22 {offsets = [0, 96], sizes = [128, 96], strides = [1, 1]} : vector<128x192xf32> to vector<128x96xf32>
    %25 = arith.maximumf %23, %24 : vector<128x96xf32>
    %26 = arith.maximumf %13, %25 : vector<128x96xf32>
    %c0_7 = arith.constant 0 : index
    %c0_8 = arith.constant 0 : index
    %27 = vector.load %arg7[%c0_7, %c0_8] : memref<1x96xf32, #tpu.memory_space<vmem>>, vector<1x96xf32>
    %28 = vector.broadcast %27 : vector<1x96xf32> to vector<128x96xf32>
    %29 = arith.addf %26, %28 : vector<128x96xf32>
    %cst_9 = arith.constant 0.000000e+00 : f32
    %30 = vector.broadcast %cst_9 : f32 to vector<128x96xf32>
    %31 = arith.maximumf %29, %30 : vector<128x96xf32>
    %32 = arith.truncf %31 : vector<128x96xf32> to vector<128x96xbf16>
    %33 = vector.shape_cast %32 : vector<128x96xbf16> to vector<8x16x96xbf16>
    %34 = vector.extract_strided_slice %33 {offsets = [0, 0, 0], sizes = [8, 8, 96], strides = [1, 1, 1]} : vector<8x16x96xbf16> to vector<8x8x96xbf16>
    %35 = vector.extract_strided_slice %33 {offsets = [0, 1, 0], sizes = [8, 8, 96], strides = [1, 1, 1]} : vector<8x16x96xbf16> to vector<8x8x96xbf16>
    %36 = vector.extract_strided_slice %33 {offsets = [0, 2, 0], sizes = [8, 8, 96], strides = [1, 1, 1]} : vector<8x16x96xbf16> to vector<8x8x96xbf16>
    %37 = vector.extract_strided_slice %33 {offsets = [0, 3, 0], sizes = [8, 8, 96], strides = [1, 1, 1]} : vector<8x16x96xbf16> to vector<8x8x96xbf16>
    %38 = vector.extract_strided_slice %33 {offsets = [0, 4, 0], sizes = [8, 8, 96], strides = [1, 1, 1]} : vector<8x16x96xbf16> to vector<8x8x96xbf16>
    %39 = tpu.concatenate %34, %35, %36, %37, %38 in 2 : vector<8x8x96xbf16>, vector<8x8x96xbf16>, vector<8x8x96xbf16>, vector<8x8x96xbf16>, vector<8x8x96xbf16> -> vector<8x8x480xbf16>
    %40 = vector.shape_cast %39 : vector<8x8x480xbf16> to vector<64x480xbf16>
    %c0_10 = arith.constant 0 : index
    %c0_11 = arith.constant 0 : index
    %41 = vector.load %arg3[%c0_10, %c0_11] : memref<480x128xbf16, #tpu.memory_space<vmem>>, vector<480x128xbf16>
    %cst_12 = arith.constant dense<0.000000e+00> : vector<64x128xf32>
    %42 = tpu.matmul %40, %41, %cst_12 {dimension_numbers = #tpu.dot_dimension_numbers<[1], [0], [0], [1], [0, 0, 1, 1], [], []>} : vector<64x480xbf16>, vector<480x128xbf16>, vector<64x128xf32> -> vector<64x128xf32>
    %43 = vector.extract_strided_slice %42 {offsets = [0, 0], sizes = [64, 64], strides = [1, 1]} : vector<64x128xf32> to vector<64x64xf32>
    %44 = vector.extract_strided_slice %42 {offsets = [0, 64], sizes = [64, 64], strides = [1, 1]} : vector<64x128xf32> to vector<64x64xf32>
    %45 = arith.maximumf %43, %44 : vector<64x64xf32>
    %c0_13 = arith.constant 0 : index
    %c0_14 = arith.constant 0 : index
    %46 = vector.load %arg8[%c0_13, %c0_14] : memref<1x64xf32, #tpu.memory_space<vmem>>, vector<1x64xf32>
    %47 = vector.broadcast %46 : vector<1x64xf32> to vector<64x64xf32>
    %48 = arith.addf %45, %47 : vector<64x64xf32>
    %cst_15 = arith.constant 0.000000e+00 : f32
    %49 = vector.broadcast %cst_15 : f32 to vector<64x64xf32>
    %50 = arith.maximumf %48, %49 : vector<64x64xf32>
    %51 = vector.shape_cast %50 : vector<64x64xf32> to vector<8x8x64xf32>
    %c0_16 = arith.constant 0 : index
    %c0_17 = arith.constant 0 : index
    %c0_18 = arith.constant 0 : index
    %52 = vector.load %arg13[%c0_16, %c0_17, %c0_18] : memref<8x8x64xf32, #tpu.memory_space<vmem>>, vector<8x8x64xf32>
    tpu.vector_store %arg13[%c0_16, %c0_17, %c0_18], %51 {strides = array<i32>} : memref<8x8x64xf32, #tpu.memory_space<vmem>>, vector<8x8x64xf32>,
    %c0_19 = arith.constant 0 : index
    %c0_20 = arith.constant 0 : index
    %c0_21 = arith.constant 0 : index
    %53 = vector.load %arg13[%c0_19, %c0_20, %c0_21] : memref<8x8x64xf32, #tpu.memory_space<vmem>>, vector<8x1x64xf32>
    %54 = vector.shape_cast %53 : vector<8x1x64xf32> to vector<8x64xf32>
    %c0_22 = arith.constant 0 : index
    %c1 = arith.constant 1 : index
    %c0_23 = arith.constant 0 : index
    %55 = vector.load %arg13[%c0_22, %c1, %c0_23] : memref<8x8x64xf32, #tpu.memory_space<vmem>>, vector<8x1x64xf32>
    %56 = vector.shape_cast %55 : vector<8x1x64xf32> to vector<8x64xf32>
    %57 = arith.maximumf %54, %56 : vector<8x64xf32>
    %c0_24 = arith.constant 0 : index
    %c2 = arith.constant 2 : index
    %c0_25 = arith.constant 0 : index
    %58 = vector.load %arg13[%c0_24, %c2, %c0_25] : memref<8x8x64xf32, #tpu.memory_space<vmem>>, vector<8x1x64xf32>
    %59 = vector.shape_cast %58 : vector<8x1x64xf32> to vector<8x64xf32>
    %c0_26 = arith.constant 0 : index
    %c3 = arith.constant 3 : index
    %c0_27 = arith.constant 0 : index
    %60 = vector.load %arg13[%c0_26, %c3, %c0_27] : memref<8x8x64xf32, #tpu.memory_space<vmem>>, vector<8x1x64xf32>
    %61 = vector.shape_cast %60 : vector<8x1x64xf32> to vector<8x64xf32>
    %62 = arith.maximumf %59, %61 : vector<8x64xf32>
    %c0_28 = arith.constant 0 : index
    %c4 = arith.constant 4 : index
    %c0_29 = arith.constant 0 : index
    %63 = vector.load %arg13[%c0_28, %c4, %c0_29] : memref<8x8x64xf32, #tpu.memory_space<vmem>>, vector<8x1x64xf32>
    %64 = vector.shape_cast %63 : vector<8x1x64xf32> to vector<8x64xf32>
    %c0_30 = arith.constant 0 : index
    %c5 = arith.constant 5 : index
    %c0_31 = arith.constant 0 : index
    %65 = vector.load %arg13[%c0_30, %c5, %c0_31] : memref<8x8x64xf32, #tpu.memory_space<vmem>>, vector<8x1x64xf32>
    %66 = vector.shape_cast %65 : vector<8x1x64xf32> to vector<8x64xf32>
    %67 = arith.maximumf %64, %66 : vector<8x64xf32>
    %c0_32 = arith.constant 0 : index
    %c6 = arith.constant 6 : index
    %c0_33 = arith.constant 0 : index
    %68 = vector.load %arg13[%c0_32, %c6, %c0_33] : memref<8x8x64xf32, #tpu.memory_space<vmem>>, vector<8x1x64xf32>
    %69 = vector.shape_cast %68 : vector<8x1x64xf32> to vector<8x64xf32>
    %c0_34 = arith.constant 0 : index
    %c7 = arith.constant 7 : index
    %c0_35 = arith.constant 0 : index
    %70 = vector.load %arg13[%c0_34, %c7, %c0_35] : memref<8x8x64xf32, #tpu.memory_space<vmem>>, vector<8x1x64xf32>
    %71 = vector.shape_cast %70 : vector<8x1x64xf32> to vector<8x64xf32>
    %72 = arith.maximumf %69, %71 : vector<8x64xf32>
    %73 = tpu.concatenate %57, %62, %67, %72 in 1 : vector<8x64xf32>, vector<8x64xf32>, vector<8x64xf32>, vector<8x64xf32> -> vector<8x256xf32>
    %74 = arith.truncf %73 : vector<8x256xf32> to vector<8x256xbf16>
    %c0_36 = arith.constant 0 : index
    %c0_37 = arith.constant 0 : index
    %75 = vector.load %arg4[%c0_36, %c0_37] : memref<256x128xbf16, #tpu.memory_space<vmem>>, vector<256x128xbf16>
    %cst_38 = arith.constant dense<0.000000e+00> : vector<8x128xf32>
    %76 = tpu.matmul %74, %75, %cst_38 {dimension_numbers = #tpu.dot_dimension_numbers<[1], [0], [0], [1], [0, 0, 1, 1], [], []>} : vector<8x256xbf16>, vector<256x128xbf16>, vector<8x128xf32> -> vector<8x128xf32>
    %c0_39 = arith.constant 0 : index
    %c0_40 = arith.constant 0 : index
    %77 = vector.load %arg9[%c0_39, %c0_40] : memref<1x128xf32, #tpu.memory_space<vmem>>, vector<1x128xf32>
    %78 = vector.broadcast %77 : vector<1x128xf32> to vector<8x128xf32>
    %79 = arith.addf %76, %78 : vector<8x128xf32>
    %cst_41 = arith.constant 0.000000e+00 : f32
    %80 = vector.broadcast %cst_41 : f32 to vector<8x128xf32>
    %81 = arith.maximumf %79, %80 : vector<8x128xf32>
    %82 = arith.truncf %81 : vector<8x128xf32> to vector<8x128xbf16>
    %c0_42 = arith.constant 0 : index
    %c0_43 = arith.constant 0 : index
    %83 = vector.load %arg5[%c0_42, %c0_43] : memref<128x128xbf16, #tpu.memory_space<vmem>>, vector<128x128xbf16>
    %cst_44 = arith.constant dense<0.000000e+00> : vector<8x128xf32>
    %84 = tpu.matmul %82, %83, %cst_44 {dimension_numbers = #tpu.dot_dimension_numbers<[1], [0], [0], [1], [0, 0, 1, 1], [], []>} : vector<8x128xbf16>, vector<128x128xbf16>, vector<8x128xf32> -> vector<8x128xf32>
    %c0_45 = arith.constant 0 : index
    %c0_46 = arith.constant 0 : index
    %85 = vector.load %arg10[%c0_45, %c0_46] : memref<1x128xf32, #tpu.memory_space<vmem>>, vector<1x128xf32>
    %86 = vector.broadcast %85 : vector<1x128xf32> to vector<8x128xf32>
    %87 = arith.addf %84, %86 : vector<8x128xf32>
    %cst_47 = arith.constant 0.000000e+00 : f32
    %88 = vector.broadcast %cst_47 : f32 to vector<8x128xf32>
    %89 = arith.maximumf %87, %88 : vector<8x128xf32>
    %90 = arith.truncf %89 : vector<8x128xf32> to vector<8x128xbf16>
    %c0_48 = arith.constant 0 : index
    %c0_49 = arith.constant 0 : index
    %91 = vector.load %arg6[%c0_48, %c0_49] : memref<128x128xbf16, #tpu.memory_space<vmem>>, vector<128x128xbf16>
    %cst_50 = arith.constant dense<0.000000e+00> : vector<8x128xf32>
    %92 = tpu.matmul %90, %91, %cst_50 {dimension_numbers = #tpu.dot_dimension_numbers<[1], [0], [0], [1], [0, 0, 1, 1], [], []>} : vector<8x128xbf16>, vector<128x128xbf16>, vector<8x128xf32> -> vector<8x128xf32>
    %c0_51 = arith.constant 0 : index
    %c0_52 = arith.constant 0 : index
    %93 = vector.load %arg11[%c0_51, %c0_52] : memref<1x128xf32, #tpu.memory_space<vmem>>, vector<1x128xf32>
    %94 = vector.broadcast %93 : vector<1x128xf32> to vector<8x128xf32>
    %95 = arith.addf %92, %94 : vector<8x128xf32>
    %c0_53 = arith.constant 0 : index
    %c0_54 = arith.constant 0 : index
    %96 = vector.load %arg12[%c0_53, %c0_54] : memref<8x128xf32, #tpu.memory_space<vmem>>, vector<8x128xf32>
    tpu.vector_store %arg12[%c0_53, %c0_54], %95 {strides = array<i32>} : memref<8x128xf32, #tpu.memory_space<vmem>>, vector<8x128xf32>,
    return
  }
  func.func @transform_0(%arg0: i32) -> (i32, i32, i32) {
    %c0_i32 = arith.constant 0 : i32
    %c0_i32_0 = arith.constant 0 : i32
    %c0_i32_1 = arith.constant 0 : i32
    return %arg0, %c0_i32, %c0_i32_0 : i32, i32, i32
  }
  func.func @transform_1(%arg0: i32) -> (i32, i32) {
    %c0_i32 = arith.constant 0 : i32
    %c0_i32_0 = arith.constant 0 : i32
    %c0_i32_1 = arith.constant 0 : i32
    return %c0_i32, %c0_i32_0 : i32, i32
  }
  func.func @transform_2(%arg0: i32) -> (i32, i32) {
    %c0_i32 = arith.constant 0 : i32
    %c0_i32_0 = arith.constant 0 : i32
    %c0_i32_1 = arith.constant 0 : i32
    return %c0_i32, %c0_i32_0 : i32, i32
  }
  func.func @transform_3(%arg0: i32) -> (i32, i32) {
    %c0_i32 = arith.constant 0 : i32
    %c0_i32_0 = arith.constant 0 : i32
    %c0_i32_1 = arith.constant 0 : i32
    return %c0_i32, %c0_i32_0 : i32, i32
  }
  func.func @transform_4(%arg0: i32) -> (i32, i32) {
    %c0_i32 = arith.constant 0 : i32
    %c0_i32_0 = arith.constant 0 : i32
    %c0_i32_1 = arith.constant 0 : i32
    return %c0_i32, %c0_i32_0 : i32, i32
  }
  func.func @transform_5(%arg0: i32) -> (i32, i32) {
    %c0_i32 = arith.constant 0 : i32
    %c0_i32_0 = arith.constant 0 : i32
    %c0_i32_1 = arith.constant 0 : i32
    return %c0_i32, %c0_i32_0 : i32, i32
  }
  func.func @transform_6(%arg0: i32) -> (i32, i32) {
    %c0_i32 = arith.constant 0 : i32
    %c0_i32_0 = arith.constant 0 : i32
    %c0_i32_1 = arith.constant 0 : i32
    return %c0_i32, %c0_i32_0 : i32, i32
  }
  func.func @transform_7(%arg0: i32) -> (i32, i32) {
    %c0_i32 = arith.constant 0 : i32
    %c0_i32_0 = arith.constant 0 : i32
    %c0_i32_1 = arith.constant 0 : i32
    return %c0_i32, %c0_i32_0 : i32, i32
  }
  func.func @transform_8(%arg0: i32) -> (i32, i32) {
    %c0_i32 = arith.constant 0 : i32
    %c0_i32_0 = arith.constant 0 : i32
    %c0_i32_1 = arith.constant 0 : i32
    return %c0_i32, %c0_i32_0 : i32, i32
  }
  func.func @transform_9(%arg0: i32) -> (i32, i32) {
    %c0_i32 = arith.constant 0 : i32
    %c0_i32_0 = arith.constant 0 : i32
    %c0_i32_1 = arith.constant 0 : i32
    return %c0_i32, %c0_i32_0 : i32, i32
  }
  func.func @transform_10(%arg0: i32) -> (i32, i32) {
    %c0_i32 = arith.constant 0 : i32
    %c0_i32_0 = arith.constant 0 : i32
    %c0_i32_1 = arith.constant 0 : i32
    return %c0_i32, %c0_i32_0 : i32, i32
  }
  func.func @transform_11(%arg0: i32) -> (i32, i32) {
    %c0_i32 = arith.constant 0 : i32
    %c0_i32_0 = arith.constant 0 : i32
    return %arg0, %c0_i32 : i32, i32
  }
}

</mosaic_0001>

<llo_original>
// kernel: lenet_forward.1
$region0: #{lenet_forward.1}
  #allocation0 [shape = 'u32[]', space=smem, size = 0x4, offset = 0x4, fixed_abs, tag = 'smem constant byte address 0x4 - core index']
  #allocation1 [shape = 'u32[144,128]{1,0:T(1,128)}', space=vmem, size = 0x12000, scoped, tag = 'internal scratch']
  #allocation2 [shape = 'f32[8,8,64]{2,1,0:T(8,128)}', space=vmem, size = 0x8000, scoped, tag = 'scratch operand']
  %s0 = inlined_call_operand.vmem [shape: f32[16,18,64], index: 0, kind: input, shape index: {}]
  %s1 = inlined_call_operand.vmem [shape: bf16[160,192], index: 1, kind: input, shape index: {}]
  %s2 = inlined_call_operand.vmem [shape: bf16[480,128], index: 2, kind: input, shape index: {}]
  %s3 = inlined_call_operand.vmem [shape: bf16[256,128], index: 3, kind: input, shape index: {}]
  %s4 = inlined_call_operand.vmem [shape: bf16[128,128], index: 4, kind: input, shape index: {}]
  %s5 = inlined_call_operand.vmem [shape: bf16[128,128], index: 5, kind: input, shape index: {}]
  %s6 = inlined_call_operand.vmem [shape: f32[1,96], index: 6, kind: input, shape index: {}]
  %s7 = inlined_call_operand.vmem [shape: f32[1,64], index: 7, kind: input, shape index: {}]
  %s8 = inlined_call_operand.vmem [shape: f32[1,128], index: 8, kind: input, shape index: {}]
  %s9 = inlined_call_operand.vmem [shape: f32[1,128], index: 9, kind: input, shape index: {}]
  %s10 = inlined_call_operand.vmem [shape: f32[1,128], index: 10, kind: input, shape index: {}]
  %s11 = inlined_call_operand.hbm [shape: f32[16,128], index: 11, kind: output, shape index: {}]
  %s12 = sld [smem:[#allocation0]]
  $region77: #{lenet_forward.1} parent=0
    _
  %s14 = ssub.s32 1, %s12
  %s15 = scalar_select 0, %s14, %s12
  $region1: #{lenet_forward.1} parent=0
    #allocation3 [shape = 'u8[8192]{0}', space=vmem, size = 0x2000, scoped, tag = 'output window, operand 0']
    #allocation4 [shape = 's32[2]{0}', space=sflag, size = 0x8, scoped, tag = 'scoped memory for lenet_forward.1']
    %16 = vsyncpa [#allocation4], 0
    %s17 = scalar_lea.sflag [#allocation4], 1
    %18 = vsyncpa %s17, 0
    loop: start=0, step=1, limit=4
    $region2: #{lenet_forward.1} parent=1 // loop_pre_header
      _
    $region3: #{lenet_forward.1} parent=1 // loop_header
      %s20 = sphi 0, %s24
      %p21 = scmp.ge.s32.totalorder %s20, 4
      %s30 = sphi 0, %s32
      %s33 = sphi 0, %s30
      %s34 = sphi 0, %s33
      %s50 = sphi 0, %s34
      %s54 = sphi 0, %s54
      %s56 = sphi 0, %s54
      %s57 = sphi 0, %s56
      %s71 = sphi 0, %s57
      %s75 = sphi 0, %s75
      %s77 = sphi 0, %s75
      %s78 = sphi 0, %s77
      %s92 = sphi 0, %s78
      %s96 = sphi 0, %s96
      %s98 = sphi 0, %s96
      %s99 = sphi 0, %s98
      %s113 = sphi 0, %s99
      %s117 = sphi 0, %s117
      %s119 = sphi 0, %s117
      %s120 = sphi 0, %s119
      %s134 = sphi 0, %s120
      %s138 = sphi 0, %s138
      %s140 = sphi 0, %s138
      %s141 = sphi 0, %s140
      %s155 = sphi 0, %s141
      %s159 = sphi 0, %s159
      %s161 = sphi 0, %s159
      %s162 = sphi 0, %s161
      %s176 = sphi 0, %s162
      %s180 = sphi 0, %s180
      %s182 = sphi 0, %s180
      %s183 = sphi 0, %s182
      %s197 = sphi 0, %s183
      %s201 = sphi 0, %s201
      %s203 = sphi 0, %s201
      %s204 = sphi 0, %s203
      %s218 = sphi 0, %s204
      %s222 = sphi 0, %s222
      %s224 = sphi 0, %s222
      %s225 = sphi 0, %s224
      %s239 = sphi 0, %s225
      %s243 = sphi 0, %s243
      %s245 = sphi 0, %s243
      %s246 = sphi 0, %s245
      %s260 = sphi 0, %s246
      %s266 = sphi 0, %s268
      %s269 = sphi 0, %s266
      %s270 = sphi 0, %s269
      %s286 = sphi 0, %s270
    $region4: #{lenet_forward.1} parent=1 // loop_header_branch
      %23 = sbr.rel (%p21) target = $region8
    $region5: #{lenet_forward.1} parent=1 // loop_body
      %s25 = ssub.s32 %s20, 1
      %s26 = ssub.s32 %s20, 2
      %s27 = sadd.s32 %s20, 1
      %s28 = ssub.s32 %s20, %s27
      %p29 = scmp.eq.s32.totalorder %s28, 0
      %s31 = sadd.s32 %s30, 1
      %s32 = scalar_select %p29, %s30, %s31
      %p35 = pneg %p29
      %p36 = scmp.eq.s32.totalorder %s20, 1
      %p37 = por %p35, %p36
      %p38 = scmp.ne.s32.totalorder %s30, %s33
      %p39 = scmp.eq.s32.totalorder %s20, 0
      %p40 = por %p38, %p39
      %p41 = scmp.ne.s32.totalorder %s30, %s33
      %p42 = scmp.eq.s32.totalorder %s25, 1
      %p43 = por %p41, %p42
      %p44 = scmp.ne.s32.totalorder %s33, %s34
      %p45 = scmp.eq.s32.totalorder %s25, 0
      %p46 = por %p44, %p45
      %p47 = scmp.ne.s32.totalorder %s33, %s34
      %p48 = scmp.eq.s32.totalorder %s26, 1
      %p49 = por %p47, %p48
      %p51 = scmp.ne.s32.totalorder %s34, %s50
      %p52 = scmp.eq.s32.totalorder %s26, 0
      %p53 = por %p51, %p52
      %s55 = sadd.s32 %s54, 1
      %p58 = scmp.eq.s32.totalorder %s20, 1
      %p59 = scmp.ne.s32.totalorder %s54, %s56
      %p60 = scmp.eq.s32.totalorder %s20, 0
      %p61 = por %p59, %p60
      %p62 = scmp.ne.s32.totalorder %s54, %s56
      %p63 = scmp.eq.s32.totalorder %s25, 1
      %p64 = por %p62, %p63
      %p65 = scmp.ne.s32.totalorder %s56, %s57
      %p66 = scmp.eq.s32.totalorder %s25, 0
      %p67 = por %p65, %p66
      %p68 = scmp.ne.s32.totalorder %s56, %s57
      %p69 = scmp.eq.s32.totalorder %s26, 1
      %p70 = por %p68, %p69
      %p72 = scmp.ne.s32.totalorder %s57, %s71
      %p73 = scmp.eq.s32.totalorder %s26, 0
      %p74 = por %p72, %p73
      %s76 = sadd.s32 %s75, 1
      %p79 = scmp.eq.s32.totalorder %s20, 1
      %p80 = scmp.ne.s32.totalorder %s75, %s77
      %p81 = scmp.eq.s32.totalorder %s20, 0
      %p82 = por %p80, %p81
      %p83 = scmp.ne.s32.totalorder %s75, %s77
      %p84 = scmp.eq.s32.totalorder %s25, 1
      %p85 = por %p83, %p84
      %p86 = scmp.ne.s32.totalorder %s77, %s78
      %p87 = scmp.eq.s32.totalorder %s25, 0
      %p88 = por %p86, %p87
      %p89 = scmp.ne.s32.totalorder %s77, %s78
      %p90 = scmp.eq.s32.totalorder %s26, 1
      %p91 = por %p89, %p90
      %p93 = scmp.ne.s32.totalorder %s78, %s92
      %p94 = scmp.eq.s32.totalorder %s26, 0
      %p95 = por %p93, %p94
      %s97 = sadd.s32 %s96, 1
      %p100 = scmp.eq.s32.totalorder %s20, 1
      %p101 = scmp.ne.s32.totalorder %s96, %s98
      %p102 = scmp.eq.s32.totalorder %s20, 0
      %p103 = por %p101, %p102
      %p104 = scmp.ne.s32.totalorder %s96, %s98
      %p105 = scmp.eq.s32.totalorder %s25, 1
      %p106 = por %p104, %p105
      %p107 = scmp.ne.s32.totalorder %s98, %s99
      %p108 = scmp.eq.s32.totalorder %s25, 0
      %p109 = por %p107, %p108
      %p110 = scmp.ne.s32.totalorder %s98, %s99
      %p111 = scmp.eq.s32.totalorder %s26, 1
      %p112 = por %p110, %p111
      %p114 = scmp.ne.s32.totalorder %s99, %s113
      %p115 = scmp.eq.s32.totalorder %s26, 0
      %p116 = por %p114, %p115
      %s118 = sadd.s32 %s117, 1
      %p121 = scmp.eq.s32.totalorder %s20, 1
      %p122 = scmp.ne.s32.totalorder %s117, %s119
      %p123 = scmp.eq.s32.totalorder %s20, 0
      %p124 = por %p122, %p123
      %p125 = scmp.ne.s32.totalorder %s117, %s119
      %p126 = scmp.eq.s32.totalorder %s25, 1
      %p127 = por %p125, %p126
      %p128 = scmp.ne.s32.totalorder %s119, %s120
      %p129 = scmp.eq.s32.totalorder %s25, 0
      %p130 = por %p128, %p129
      %p131 = scmp.ne.s32.totalorder %s119, %s120
      %p132 = scmp.eq.s32.totalorder %s26, 1
      %p133 = por %p131, %p132
      %p135 = scmp.ne.s32.totalorder %s120, %s134
      %p136 = scmp.eq.s32.totalorder %s26, 0
      %p137 = por %p135, %p136
      %s139 = sadd.s32 %s138, 1
      %p142 = scmp.eq.s32.totalorder %s20, 1
      %p143 = scmp.ne.s32.totalorder %s138, %s140
      %p144 = scmp.eq.s32.totalorder %s20, 0
      %p145 = por %p143, %p144
      %p146 = scmp.ne.s32.totalorder %s138, %s140
      %p147 = scmp.eq.s32.totalorder %s25, 1
      %p148 = por %p146, %p147
      %p149 = scmp.ne.s32.totalorder %s140, %s141
      %p150 = scmp.eq.s32.totalorder %s25, 0
      %p151 = por %p149, %p150
      %p152 = scmp.ne.s32.totalorder %s140, %s141
      %p153 = scmp.eq.s32.totalorder %s26, 1
      %p154 = por %p152, %p153
      %p156 = scmp.ne.s32.totalorder %s141, %s155
      %p157 = scmp.eq.s32.totalorder %s26, 0
      %p158 = por %p156, %p157
      %s160 = sadd.s32 %s159, 1
      %p163 = scmp.eq.s32.totalorder %s20, 1
      %p164 = scmp.ne.s32.totalorder %s159, %s161
      %p165 = scmp.eq.s32.totalorder %s20, 0
      %p166 = por %p164, %p165
      %p167 = scmp.ne.s32.totalorder %s159, %s161
      %p168 = scmp.eq.s32.totalorder %s25, 1
      %p169 = por %p167, %p168
      %p170 = scmp.ne.s32.totalorder %s161, %s162
      %p171 = scmp.eq.s32.totalorder %s25, 0
      %p172 = por %p170, %p171
      %p173 = scmp.ne.s32.totalorder %s161, %s162
      %p174 = scmp.eq.s32.totalorder %s26, 1
      %p175 = por %p173, %p174
      %p177 = scmp.ne.s32.totalorder %s162, %s176
      %p178 = scmp.eq.s32.totalorder %s26, 0
      %p179 = por %p177, %p178
      %s181 = sadd.s32 %s180, 1
      %p184 = scmp.eq.s32.totalorder %s20, 1
      %p185 = scmp.ne.s32.totalorder %s180, %s182
      %p186 = scmp.eq.s32.totalorder %s20, 0
      %p187 = por %p185, %p186
      %p188 = scmp.ne.s32.totalorder %s180, %s182
      %p189 = scmp.eq.s32.totalorder %s25, 1
      %p190 = por %p188, %p189
      %p191 = scmp.ne.s32.totalorder %s182, %s183
      %p192 = scmp.eq.s32.totalorder %s25, 0
      %p193 = por %p191, %p192
      %p194 = scmp.ne.s32.totalorder %s182, %s183
      %p195 = scmp.eq.s32.totalorder %s26, 1
      %p196 = por %p194, %p195
      %p198 = scmp.ne.s32.totalorder %s183, %s197
      %p199 = scmp.eq.s32.totalorder %s26, 0
      %p200 = por %p198, %p199
      %s202 = sadd.s32 %s201, 1
      %p205 = scmp.eq.s32.totalorder %s20, 1
      %p206 = scmp.ne.s32.totalorder %s201, %s203
      %p207 = scmp.eq.s32.totalorder %s20, 0
      %p208 = por %p206, %p207
      %p209 = scmp.ne.s32.totalorder %s201, %s203
      %p210 = scmp.eq.s32.totalorder %s25, 1
      %p211 = por %p209, %p210
      %p212 = scmp.ne.s32.totalorder %s203, %s204
      %p213 = scmp.eq.s32.totalorder %s25, 0
      %p214 = por %p212, %p213
      %p215 = scmp.ne.s32.totalorder %s203, %s204
      %p216 = scmp.eq.s32.totalorder %s26, 1
      %p217 = por %p215, %p216
      %p219 = scmp.ne.s32.totalorder %s204, %s218
      %p220 = scmp.eq.s32.totalorder %s26, 0
      %p221 = por %p219, %p220
      %s223 = sadd.s32 %s222, 1
      %p226 = scmp.eq.s32.totalorder %s20, 1
      %p227 = scmp.ne.s32.totalorder %s222, %s224
      %p228 = scmp.eq.s32.totalorder %s20, 0
      %p229 = por %p227, %p228
      %p230 = scmp.ne.s32.totalorder %s222, %s224
      %p231 = scmp.eq.s32.totalorder %s25, 1
      %p232 = por %p230, %p231
      %p233 = scmp.ne.s32.totalorder %s224, %s225
      %p234 = scmp.eq.s32.totalorder %s25, 0
      %p235 = por %p233, %p234
      %p236 = scmp.ne.s32.totalorder %s224, %s225
      %p237 = scmp.eq.s32.totalorder %s26, 1
      %p238 = por %p236, %p237
      %p240 = scmp.ne.s32.totalorder %s225, %s239
      %p241 = scmp.eq.s32.totalorder %s26, 0
      %p242 = por %p240, %p241
      %s244 = sadd.s32 %s243, 1
      %p247 = scmp.eq.s32.totalorder %s20, 1
      %p248 = scmp.ne.s32.totalorder %s243, %s245
      %p249 = scmp.eq.s32.totalorder %s20, 0
      %p250 = por %p248, %p249
      %p251 = scmp.ne.s32.totalorder %s243, %s245
      %p252 = scmp.eq.s32.totalorder %s25, 1
      %p253 = por %p251, %p252
      %p254 = scmp.ne.s32.totalorder %s245, %s246
      %p255 = scmp.eq.s32.totalorder %s25, 0
      %p256 = por %p254, %p255
      %p257 = scmp.ne.s32.totalorder %s245, %s246
      %p258 = scmp.eq.s32.totalorder %s26, 1
      %p259 = por %p257, %p258
      %p261 = scmp.ne.s32.totalorder %s246, %s260
      %p262 = scmp.eq.s32.totalorder %s26, 0
      %p263 = por %p261, %p262
      %s264 = ssub.s32 %s20, %s27
      %p265 = scmp.eq.s32.totalorder %s264, 0
      %s267 = sadd.s32 %s266, 1
      %s268 = scalar_select %p265, %s266, %s267
      %p271 = pneg %p265
      %p272 = scmp.eq.s32.totalorder %s20, 1
      %p273 = por %p271, %p272
      %p274 = scmp.ne.s32.totalorder %s266, %s269
      %p275 = scmp.eq.s32.totalorder %s20, 0
      %p276 = por %p274, %p275
      %p277 = scmp.ne.s32.totalorder %s266, %s269
      %p278 = scmp.eq.s32.totalorder %s25, 1
      %p279 = por %p277, %p278
      %p280 = scmp.ne.s32.totalorder %s269, %s270
      %p281 = scmp.eq.s32.totalorder %s25, 0
      %p282 = por %p280, %p281
      %p283 = scmp.ne.s32.totalorder %s269, %s270
      %p284 = scmp.eq.s32.totalorder %s26, 1
      %p285 = por %p283, %p284
      %p287 = scmp.ne.s32.totalorder %s270, %s286
      %p288 = scmp.eq.s32.totalorder %s26, 0
      %p289 = por %p287, %p288
      %p290 = scmp.le.s32.totalorder 1, %s20
      %p291 = scmp.lt.s32.totalorder %s20, 3
      %p292 = pnand %p290, %p291
      %p293 = pneg %p292
      // Predicated region
      $region9: #{lenet_forward.1} parent=5 // pred_check
        _
      $region10: #{lenet_forward.1} parent=5 // pred_check_branch
        %295 = sbr.rel (%p292) target = $region12
      $region11: #{lenet_forward.1} parent=5 // pred_region
        %s296 = ssub.s32 %s20, 1
        // Predicated region
        $region13: #{lenet_forward.1} parent=11 // pred_check
          %p297 = pneg %p67
        $region14: #{lenet_forward.1} parent=11 // pred_check_branch
          %299 = sbr.rel (%p297) target = $region16
        $region15: #{lenet_forward.1} parent=11 // pred_region
          _
        $region16: #{lenet_forward.1} parent=11 // pred_fallthru
          _
        // Predicated region
        $region17: #{lenet_forward.1} parent=11 // pred_check
          %p300 = pneg %p88
        $region18: #{lenet_forward.1} parent=11 // pred_check_branch
          %302 = sbr.rel (%p300) target = $region20
        $region19: #{lenet_forward.1} parent=11 // pred_region
          _
        $region20: #{lenet_forward.1} parent=11 // pred_fallthru
          _
        // Predicated region
        $region21: #{lenet_forward.1} parent=11 // pred_check
          %p303 = pneg %p109
        $region22: #{lenet_forward.1} parent=11 // pred_check_branch
          %305 = sbr.rel (%p303) target = $region24
        $region23: #{lenet_forward.1} parent=11 // pred_region
          _
        $region24: #{lenet_forward.1} parent=11 // pred_fallthru
          _
        // Predicated region
        $region25: #{lenet_forward.1} parent=11 // pred_check
          %p306 = pneg %p130
        $region26: #{lenet_forward.1} parent=11 // pred_check_branch
          %308 = sbr.rel (%p306) target = $region28
        $region27: #{lenet_forward.1} parent=11 // pred_region
          _
        $region28: #{lenet_forward.1} parent=11 // pred_fallthru
          _
        // Predicated region
        $region29: #{lenet_forward.1} parent=11 // pred_check
          %p309 = pneg %p151
        $region30: #{lenet_forward.1} parent=11 // pred_check_branch
          %311 = sbr.rel (%p309) target = $region32
        $region31: #{lenet_forward.1} parent=11 // pred_region
          _
        $region32: #{lenet_forward.1} parent=11 // pred_fallthru
          _
        // Predicated region
        $region33: #{lenet_forward.1} parent=11 // pred_check
          %p312 = pneg %p172
        $region34: #{lenet_forward.1} parent=11 // pred_check_branch
          %314 = sbr.rel (%p312) target = $region36
        $region35: #{lenet_forward.1} parent=11 // pred_region
          _
        $region36: #{lenet_forward.1} parent=11 // pred_fallthru
          _
        // Predicated region
        $region37: #{lenet_forward.1} parent=11 // pred_check
          %p315 = pneg %p193
        $region38: #{lenet_forward.1} parent=11 // pred_check_branch
          %317 = sbr.rel (%p315) target = $region40
        $region39: #{lenet_forward.1} parent=11 // pred_region
          _
        $region40: #{lenet_forward.1} parent=11 // pred_fallthru
          _
        // Predicated region
        $region41: #{lenet_forward.1} parent=11 // pred_check
          %p318 = pneg %p214
        $region42: #{lenet_forward.1} parent=11 // pred_check_branch
          %320 = sbr.rel (%p318) target = $region44
        $region43: #{lenet_forward.1} parent=11 // pred_region
          _
        $region44: #{lenet_forward.1} parent=11 // pred_fallthru
          _
        // Predicated region
        $region45: #{lenet_forward.1} parent=11 // pred_check
          %p321 = pneg %p235
        $region46: #{lenet_forward.1} parent=11 // pred_check_branch
          %323 = sbr.rel (%p321) target = $region48
        $region47: #{lenet_forward.1} parent=11 // pred_region
          _
        $region48: #{lenet_forward.1} parent=11 // pred_fallthru
          _
        // Predicated region
        $region49: #{lenet_forward.1} parent=11 // pred_check
          %p324 = pneg %p256
        $region50: #{lenet_forward.1} parent=11 // pred_check_branch
          %326 = sbr.rel (%p324) target = $region52
        $region51: #{lenet_forward.1} parent=11 // pred_region
          _
        $region52: #{lenet_forward.1} parent=11 // pred_fallthru
          _
      $region12: #{lenet_forward.1} parent=5 // pred_fallthru
        _
      %p327 = scmp.lt.s32.totalorder %s20, 2
      // Predicated region
      $region53: #{lenet_forward.1} parent=5 // pred_check
        %p328 = pneg %p327
      $region54: #{lenet_forward.1} parent=5 // pred_check_branch
        %330 = sbr.rel (%p328) target = $region56
      $region55: #{lenet_forward.1} parent=5 // pred_region
        // Predicated region
        $region57: #{lenet_forward.1} parent=55 // pred_check
          %p331 = pneg %p40
        $region58: #{lenet_forward.1} parent=55 // pred_check_branch
          %333 = sbr.rel (%p331) target = $region60
        $region59: #{lenet_forward.1} parent=55 // pred_region
          %s334 = smul.u32 8, %s20
          %p335 = scmp.lt.s32.totalorder %s334, 15
          %s336 = scalar_select %p335, %s334, 15
          %s337 = smul.addr %s336, 3
          %s338 = smul.addr %s337, 8
          %s339 = scalar_lea.vmem %s0, %s338
          %s340 = smul.u32 8, %s20
        $region60: #{lenet_forward.1} parent=55 // pred_fallthru
          _
      $region56: #{lenet_forward.1} parent=5 // pred_fallthru
        _
      %p341 = scmp.le.s32.totalorder 1, %s20
      %p342 = scmp.lt.s32.totalorder %s20, 3
      %p343 = pnand %p341, %p342
      %p344 = pneg %p343
      // Predicated region
      $region61: #{lenet_forward.1} parent=5 // pred_check
        _
      $region62: #{lenet_forward.1} parent=5 // pred_check_branch
        %346 = sbr.rel (%p343) target = $region64
      $region63: #{lenet_forward.1} parent=5 // pred_region
        %s347 = ssub.s32 %s20, 1
        %s348 = smul.u32 8, %s25
        %p349 = scmp.lt.s32.totalorder %s348, 15
        %s350 = scalar_select %p349, %s348, 15
        %s351 = smul.addr %s350, 3
        %s352 = smul.addr %s351, 8
        %s353 = scalar_lea.vmem %s0, %s352
        %p354 = pneg %p46
        %p355 = pneg %p43
        %p356 = pneg %p67
        %p357 = pneg %p64
        %p358 = pneg %p88
        %p359 = pneg %p85
        %p360 = pneg %p109
        %p361 = pneg %p106
        %p362 = pneg %p130
        %p363 = pneg %p127
        %p364 = pneg %p151
        %p365 = pneg %p148
        %p366 = pneg %p172
        %p367 = pneg %p169
        %p368 = pneg %p193
        %p369 = pneg %p190
        %p370 = pneg %p214
        %p371 = pneg %p211
        %p372 = pneg %p235
        %p373 = pneg %p232
        %p374 = pneg %p256
        %p375 = pneg %p253
        %p376 = pneg %p282
        %p377 = pneg %p279
        %s378 = sand.u32 %s269, 1
        %s379 = scalar_lea.sflag [#allocation4], %s378
        %s380 = sand.u32 %s269, 1
        %s381 = smul.addr %s380, 8
        %s382 = scalar_lea.vmem [#allocation3], %s381
        %s383 = smul.u32 8, %s25
        %p384 = scmp.lt.s32.totalorder %s383, 15
        %s385 = scalar_select %p384, %s383, 15
        %s386 = smul.addr %s385, 3
        %s387 = smul.addr %s386, 8
        %s388 = scalar_lea.vmem %s0, %s387
        %s389 = smul.u32 8, %s25
        %v391 = vld [vmem:[%s388] sm:$0xff]
        %v392 = vld [vmem:[%s388 + $0x8] sm:$0xff]
        %v393 = vld [vmem:[%s388 + $0x10] sm:$0x3]
        %v394 = vld [vmem:[%s388 + $0x18] sm:$0xff]
        %v395 = vld [vmem:[%s388 + $0x20] sm:$0xff]
        %v396 = vld [vmem:[%s388 + $0x28] sm:$0x3]
        %v397 = vld [vmem:[%s388 + $0x30] sm:$0xff]
        %v398 = vld [vmem:[%s388 + $0x38] sm:$0xff]
        %v399 = vld [vmem:[%s388 + $0x40] sm:$0x3]
        %v400 = vld [vmem:[%s388 + $0x48] sm:$0xff]
        %v401 = vld [vmem:[%s388 + $0x50] sm:$0xff]
        %v402 = vld [vmem:[%s388 + $0x58] sm:$0x3]
        %v403 = vld [vmem:[%s388 + $0x60] sm:$0xff]
        %v404 = vld [vmem:[%s388 + $0x68] sm:$0xff]
        %v405 = vld [vmem:[%s388 + $0x70] sm:$0x3]
        %v406 = vld [vmem:[%s388 + $0x78] sm:$0xff]
        %v407 = vld [vmem:[%s388 + $0x80] sm:$0xff]
        %v408 = vld [vmem:[%s388 + $0x88] sm:$0x3]
        %v409 = vld [vmem:[%s388 + $0x90] sm:$0xff]
        %v410 = vld [vmem:[%s388 + $0x98] sm:$0xff]
        %v411 = vld [vmem:[%s388 + $0xa0] sm:$0x3]
        %v412 = vld [vmem:[%s388 + $0xa8] sm:$0xff]
        %v413 = vld [vmem:[%s388 + $0xb0] sm:$0xff]
        %v414 = vld [vmem:[%s388 + $0xb8] sm:$0x3]
        %v415 = vpack.c.bf16 %v392, %v391
        %v416 = vpack.c.bf16 %v393, %v393
        %v417 = vpack.c.bf16 %v395, %v394
        %v418 = vpack.c.bf16 %v396, %v396
        %v419 = vpack.c.bf16 %v398, %v397
        %v420 = vpack.c.bf16 %v399, %v399
        %v421 = vpack.c.bf16 %v401, %v400
        %v422 = vpack.c.bf16 %v402, %v402
        %v423 = vpack.c.bf16 %v404, %v403
        %v424 = vpack.c.bf16 %v405, %v405
        %v425 = vpack.c.bf16 %v407, %v406
        %v426 = vpack.c.bf16 %v408, %v408
        %v427 = vpack.c.bf16 %v410, %v409
        %v428 = vpack.c.bf16 %v411, %v411
        %v429 = vpack.c.bf16 %v413, %v412
        %v430 = vpack.c.bf16 %v414, %v414
        %vm431 = vsmask.f32 7424
        %v433 = vshrl.u32 %v415, 16
        %v435 = vshll.u32 %v415, 16
        %v437 = vrot.slane %v435, 1
        %v438 = vor.u32 %v433, %v437
        %v440 = vshll.u32 %v416, 16
        %v442 = vrot.slane %v440, 1
        %v443 = vsel %vm431, %v438, %v442
        %v445 = vshrl.u32 %v417, 16
        %v447 = vshll.u32 %v417, 16
        %v449 = vrot.slane %v447, 1
        %v450 = vor.u32 %v445, %v449
        %v452 = vshll.u32 %v418, 16
        %v454 = vrot.slane %v452, 1
        %v455 = vsel %vm431, %v450, %v454
        %v457 = vshrl.u32 %v419, 16
        %v459 = vshll.u32 %v419, 16
        %v461 = vrot.slane %v459, 1
        %v462 = vor.u32 %v457, %v461
        %v464 = vshll.u32 %v420, 16
        %v466 = vrot.slane %v464, 1
        %v467 = vsel %vm431, %v462, %v466
        %v469 = vshrl.u32 %v421, 16
        %v471 = vshll.u32 %v421, 16
        %v473 = vrot.slane %v471, 1
        %v474 = vor.u32 %v469, %v473
        %v476 = vshll.u32 %v422, 16
        %v478 = vrot.slane %v476, 1
        %v479 = vsel %vm431, %v474, %v478
        %v481 = vshrl.u32 %v423, 16
        %v483 = vshll.u32 %v423, 16
        %v485 = vrot.slane %v483, 1
        %v486 = vor.u32 %v481, %v485
        %v488 = vshll.u32 %v424, 16
        %v490 = vrot.slane %v488, 1
        %v491 = vsel %vm431, %v486, %v490
        %v493 = vshrl.u32 %v425, 16
        %v495 = vshll.u32 %v425, 16
        %v497 = vrot.slane %v495, 1
        %v498 = vor.u32 %v493, %v497
        %v500 = vshll.u32 %v426, 16
        %v502 = vrot.slane %v500, 1
        %v503 = vsel %vm431, %v498, %v502
        %v505 = vshrl.u32 %v427, 16
        %v507 = vshll.u32 %v427, 16
        %v509 = vrot.slane %v507, 1
        %v510 = vor.u32 %v505, %v509
        %v512 = vshll.u32 %v428, 16
        %v514 = vrot.slane %v512, 1
        %v515 = vsel %vm431, %v510, %v514
        %v517 = vshrl.u32 %v429, 16
        %v519 = vshll.u32 %v429, 16
        %v521 = vrot.slane %v519, 1
        %v522 = vor.u32 %v517, %v521
        %v524 = vshll.u32 %v430, 16
        %v526 = vrot.slane %v524, 1
        %v527 = vsel %vm431, %v522, %v526
        %528 = vrot.lane.b32.xlu0 %v443, 64
        %v529 = vpop.permute.xlu0 %528
        %530 = vrot.lane.b32.xlu0 %v455, 64
        %v531 = vpop.permute.xlu0 %530
        %532 = vrot.lane.b32.xlu0 %v467, 64
        %v533 = vpop.permute.xlu0 %532
        %534 = vrot.lane.b32.xlu0 %v479, 64
        %v535 = vpop.permute.xlu0 %534
        %536 = vrot.lane.b32.xlu0 %v491, 64
        %v537 = vpop.permute.xlu0 %536
        %538 = vrot.lane.b32.xlu0 %v503, 64
        %v539 = vpop.permute.xlu0 %538
        %540 = vrot.lane.b32.xlu0 %v515, 64
        %v541 = vpop.permute.xlu0 %540
        %542 = vrot.lane.b32.xlu0 %v527, 64
        %v543 = vpop.permute.xlu0 %542
        %vm560 = vcmask 1046528
        %v561 = vrot.slane %v415, 1
        %v562 = vrot.slane %v416, 1
        %v563 = vsel %vm560, %v561, %v562
        %v564 = vrot.slane %v417, 1
        %v565 = vrot.slane %v418, 1
        %v566 = vsel %vm560, %v564, %v565
        %v567 = vrot.slane %v419, 1
        %v568 = vrot.slane %v420, 1
        %v569 = vsel %vm560, %v567, %v568
        %v570 = vrot.slane %v421, 1
        %v571 = vrot.slane %v422, 1
        %v572 = vsel %vm560, %v570, %v571
        %v573 = vrot.slane %v423, 1
        %v574 = vrot.slane %v424, 1
        %v575 = vsel %vm560, %v573, %v574
        %v576 = vrot.slane %v425, 1
        %v577 = vrot.slane %v426, 1
        %v578 = vsel %vm560, %v576, %v577
        %v579 = vrot.slane %v427, 1
        %v580 = vrot.slane %v428, 1
        %v581 = vsel %vm560, %v579, %v580
        %v582 = vrot.slane %v429, 1
        %v583 = vrot.slane %v430, 1
        %v584 = vsel %vm560, %v582, %v583
        %vm585 = vcmask 261120
        %vm586 = vcmask 523264
        %v588 = vsel %vm586, %v415, %v529
        %v590 = vsel %vm586, %v417, %v531
        %v592 = vsel %vm586, %v419, %v533
        %v594 = vsel %vm586, %v421, %v535
        %v596 = vsel %vm586, %v423, %v537
        %v598 = vsel %vm586, %v425, %v539
        %v600 = vsel %vm586, %v427, %v541
        %v602 = vsel %vm586, %v429, %v543
        %vm603 = vcmask 785408
        %v604 = vsel %vm603, %v588, %v529
        %v606 = vsel %vm603, %v590, %v531
        %v608 = vsel %vm603, %v592, %v533
        %v610 = vsel %vm603, %v594, %v535
        %v612 = vsel %vm603, %v596, %v537
        %v614 = vsel %vm603, %v598, %v539
        %v616 = vsel %vm603, %v600, %v541
        %v618 = vsel %vm603, %v602, %v543
        %v620 = vld [vmem:[%s1] sm:$0xff]
        %v621 = vld [vmem:[%s1 + $0x8] sm:$0xff]
        %v622 = vld [vmem:[%s1 + $0x10] sm:$0xff]
        %v623 = vld [vmem:[%s1 + $0x18] sm:$0xff]
        %v624 = vld [vmem:[%s1 + $0x20] sm:$0xff]
        %v625 = vld [vmem:[%s1 + $0x28] sm:$0xff]
        %v626 = vld [vmem:[%s1 + $0x30] sm:$0xff]
        %v627 = vld [vmem:[%s1 + $0x38] sm:$0xff]
        %v628 = vld [vmem:[%s1 + $0x40] sm:$0xff]
        %v629 = vld [vmem:[%s1 + $0x48] sm:$0xff]
        %v630 = vld [vmem:[%s1 + $0x50] sm:$0xff]
        %v631 = vld [vmem:[%s1 + $0x58] sm:$0xff]
        %v632 = vld [vmem:[%s1 + $0x60] sm:$0xff]
        %v633 = vld [vmem:[%s1 + $0x68] sm:$0xff]
        %v634 = vld [vmem:[%s1 + $0x70] sm:$0xff]
        %v635 = vld [vmem:[%s1 + $0x78] sm:$0xff]
        %v636 = vld [vmem:[%s1 + $0x80] sm:$0xff]
        %v637 = vld [vmem:[%s1 + $0x88] sm:$0xff]
        %v638 = vld [vmem:[%s1 + $0x90] sm:$0xff]
        %v639 = vld [vmem:[%s1 + $0x98] sm:$0xff]
        %v660 = vunpack.c.l.b16 %v620
        %v661 = vunpack.c.h.b16 %v620
        %v662 = vunpack.c.l.b16 %v621
        %v663 = vunpack.c.h.b16 %v621
        %v664 = vunpack.c.l.b16 %v622
        %v665 = vunpack.c.h.b16 %v622
        %v666 = vunpack.c.l.b16 %v623
        %v667 = vunpack.c.h.b16 %v623
        %v668 = vunpack.c.l.b16 %v624
        %v669 = vunpack.c.h.b16 %v624
        %v670 = vunpack.c.l.b16 %v625
        %v671 = vunpack.c.h.b16 %v625
        %v672 = vunpack.c.l.b16 %v626
        %v673 = vunpack.c.h.b16 %v626
        %v674 = vunpack.c.l.b16 %v627
        %v675 = vunpack.c.h.b16 %v627
        %v676 = vunpack.c.l.b16 %v628
        %v677 = vunpack.c.h.b16 %v628
        %v678 = vunpack.c.l.b16 %v629
        %v679 = vunpack.c.h.b16 %v629
        %v680 = vunpack.c.l.b16 %v630
        %v681 = vunpack.c.h.b16 %v630
        %v682 = vunpack.c.l.b16 %v631
        %v683 = vunpack.c.h.b16 %v631
        %v684 = vunpack.c.l.b16 %v632
        %v685 = vunpack.c.h.b16 %v632
        %v686 = vunpack.c.l.b16 %v633
        %v687 = vunpack.c.h.b16 %v633
        %v688 = vunpack.c.l.b16 %v634
        %v689 = vunpack.c.h.b16 %v634
        %v690 = vunpack.c.l.b16 %v635
        %v691 = vunpack.c.h.b16 %v635
        %v692 = vunpack.c.l.b16 %v636
        %v693 = vunpack.c.h.b16 %v636
        %v694 = vunpack.c.l.b16 %v637
        %v695 = vunpack.c.h.b16 %v637
        %v696 = vunpack.c.l.b16 %v638
        %v697 = vunpack.c.h.b16 %v638
        %v698 = vunpack.c.l.b16 %v639
        %v699 = vunpack.c.h.b16 %v639
        %v700 = vpack.c.b16 %v662, %v660
        %v701 = vpack.c.b16 %v663, %v661
        %v702 = vpack.c.b16 %v666, %v664
        %v703 = vpack.c.b16 %v667, %v665
        %v704 = vpack.c.b16 %v670, %v668
        %v705 = vpack.c.b16 %v671, %v669
        %v706 = vpack.c.b16 %v674, %v672
        %v707 = vpack.c.b16 %v675, %v673
        %v708 = vpack.c.b16 %v678, %v676
        %v709 = vpack.c.b16 %v679, %v677
        %v710 = vpack.c.b16 %v682, %v680
        %v711 = vpack.c.b16 %v683, %v681
        %v712 = vpack.c.b16 %v686, %v684
        %v713 = vpack.c.b16 %v687, %v685
        %v714 = vpack.c.b16 %v690, %v688
        %v715 = vpack.c.b16 %v691, %v689
        %v716 = vpack.c.b16 %v694, %v692
        %v717 = vpack.c.b16 %v695, %v693
        %v718 = vpack.c.b16 %v698, %v696
        %v719 = vpack.c.b16 %v699, %v697
        %v741 = vsel %vm585, %v563, 0
        %v744 = vsel %vm585, %v566, 0
        %v747 = vsel %vm585, %v569, 0
        %v750 = vsel %vm585, %v572, 0
        %v753 = vsel %vm585, %v575, 0
        %v756 = vsel %vm585, %v578, 0
        %v759 = vsel %vm585, %v581, 0
        %v762 = vsel %vm585, %v584, 0
        %764 = vmatprep.subr.bf16.mxu0 %v715
        %765 = vmatpush1.bf16.msra.mxu0 %v714
        %766 = vmatprep.subr.bf16.mxu0 %v713
        %767 = vmatpush1.bf16.msra.mxu0 %v712
        %768 = vmatprep.subr.bf16.mxu0 %v711
        %769 = vmatpush1.bf16.msra.mxu0 %v710
        %770 = vmatprep.subr.bf16.mxu0 %v709
        %771 = vmatpush1.bf16.msra.mxu0 %v708
        %772 = vmatprep.subr.bf16.mxu0 %v707
        %773 = vmatpush1.bf16.msra.mxu0 %v706
        %774 = vmatprep.subr.bf16.mxu0 %v705
        %775 = vmatpush1.bf16.msra.mxu0 %v704
        %776 = vmatprep.subr.bf16.mxu0 %v703
        %777 = vmatpush1.bf16.msra.mxu0 %v702
        %778 = vmatprep.subr.bf16.mxu0 %v701
        %779 = vmatpush1.bf16.msra.mxu0 %v700
        %780 = vmatprep.subr.bf16.mxu0 0
        %781 = vmatpush2.bf16.msra.mxu0 0
        %782 = vmatprep.subr.bf16.mxu0 0
        %783 = vmatpush2.bf16.msra.mxu0 0
        %784 = vmatprep.subr.bf16.mxu0 0
        %785 = vmatpush2.bf16.msra.mxu0 0
        %786 = vmatprep.subr.bf16.mxu0 0
        %787 = vmatpush2.bf16.msra.mxu0 0
        %788 = vmatprep.subr.bf16.mxu0 0
        %789 = vmatpush2.bf16.msra.mxu0 0
        %790 = vmatprep.subr.bf16.mxu0 0
        %791 = vmatpush2.bf16.msra.mxu0 0
        %792 = vmatprep.subr.bf16.mxu0 %v719
        %793 = vmatpush2.bf16.msra.mxu0 %v718
        %794 = vmatprep.subr.bf16.mxu0 %v717
        %795 = vmatpush2.bf16.msra.mxu0 %v716
        %796 = vmatprep.mubr.bf16.mxu0 %v741
        %797 = vmatmul.mubr.bf16.gmra.mxu0 %v604
        %v798 = vpop.f32.mrf.mxu0
        %v799 = vadd.f32 0.0, %v798
        %v800 = vpop.f32.mrf.mxu0
        %v801 = vadd.f32 0.0, %v800
        %v802 = vpop.f32.mrf.mxu0
        %v803 = vadd.f32 0.0, %v802
        %v804 = vpop.f32.mrf.mxu0
        %v805 = vadd.f32 0.0, %v804
        %806 = vmatprep.mubr.bf16.mxu0 %v744
        %807 = vmatmul.mubr.bf16.gmra.mxu0 %v606
        %v808 = vpop.f32.mrf.mxu0
        %v809 = vadd.f32 0.0, %v808
        %v810 = vpop.f32.mrf.mxu0
        %v811 = vadd.f32 0.0, %v810
        %v812 = vpop.f32.mrf.mxu0
        %v813 = vadd.f32 0.0, %v812
        %v814 = vpop.f32.mrf.mxu0
        %v815 = vadd.f32 0.0, %v814
        %816 = vmatprep.mubr.bf16.mxu0 %v747
        %817 = vmatmul.mubr.bf16.gmra.mxu0 %v608
        %v818 = vpop.f32.mrf.mxu0
        %v819 = vadd.f32 0.0, %v818
        %v820 = vpop.f32.mrf.mxu0
        %v821 = vadd.f32 0.0, %v820
        %v822 = vpop.f32.mrf.mxu0
        %v823 = vadd.f32 0.0, %v822
        %v824 = vpop.f32.mrf.mxu0
        %v825 = vadd.f32 0.0, %v824
        %826 = vmatprep.mubr.bf16.mxu0 %v750
        %827 = vmatmul.mubr.bf16.gmra.mxu0 %v610
        %v828 = vpop.f32.mrf.mxu0
        %v829 = vadd.f32 0.0, %v828
        %v830 = vpop.f32.mrf.mxu0
        %v831 = vadd.f32 0.0, %v830
        %v832 = vpop.f32.mrf.mxu0
        %v833 = vadd.f32 0.0, %v832
        %v834 = vpop.f32.mrf.mxu0
        %v835 = vadd.f32 0.0, %v834
        %836 = vmatprep.mubr.bf16.mxu0 %v753
        %837 = vmatmul.mubr.bf16.gmra.mxu0 %v612
        %v838 = vpop.f32.mrf.mxu0
        %v839 = vadd.f32 0.0, %v838
        %v840 = vpop.f32.mrf.mxu0
        %v841 = vadd.f32 0.0, %v840
        %v842 = vpop.f32.mrf.mxu0
        %v843 = vadd.f32 0.0, %v842
        %v844 = vpop.f32.mrf.mxu0
        %v845 = vadd.f32 0.0, %v844
        %846 = vmatprep.mubr.bf16.mxu0 %v756
        %847 = vmatmul.mubr.bf16.gmra.mxu0 %v614
        %v848 = vpop.f32.mrf.mxu0
        %v849 = vadd.f32 0.0, %v848
        %v850 = vpop.f32.mrf.mxu0
        %v851 = vadd.f32 0.0, %v850
        %v852 = vpop.f32.mrf.mxu0
        %v853 = vadd.f32 0.0, %v852
        %v854 = vpop.f32.mrf.mxu0
        %v855 = vadd.f32 0.0, %v854
        %856 = vmatprep.mubr.bf16.mxu0 %v759
        %857 = vmatmul.mubr.bf16.gmra.mxu0 %v616
        %v858 = vpop.f32.mrf.mxu0
        %v859 = vadd.f32 0.0, %v858
        %v860 = vpop.f32.mrf.mxu0
        %v861 = vadd.f32 0.0, %v860
        %v862 = vpop.f32.mrf.mxu0
        %v863 = vadd.f32 0.0, %v862
        %v864 = vpop.f32.mrf.mxu0
        %v865 = vadd.f32 0.0, %v864
        %866 = vmatprep.mubr.bf16.mxu0 %v762
        %867 = vmatmul.mubr.bf16.gmra.mxu0 %v618
        %v868 = vpop.f32.mrf.mxu0
        %v869 = vadd.f32 0.0, %v868
        %v870 = vpop.f32.mrf.mxu0
        %v871 = vadd.f32 0.0, %v870
        %v872 = vpop.f32.mrf.mxu0
        %v873 = vadd.f32 0.0, %v872
        %v874 = vpop.f32.mrf.mxu0
        %v875 = vadd.f32 0.0, %v874
        %876 = vdwg.mxu0
        %909 = vrot.lane.b32.xlu0 %v799, 32
        %v910 = vpop.permute.xlu0 %909
        %911 = vrot.lane.b32.xlu0 %v801, 32
        %v912 = vpop.permute.xlu0 %911
        %913 = vrot.lane.b32.xlu0 %v803, 32
        %v914 = vpop.permute.xlu0 %913
        %915 = vrot.lane.b32.xlu0 %v805, 32
        %v916 = vpop.permute.xlu0 %915
        %917 = vrot.lane.b32.xlu0 %v809, 32
        %v918 = vpop.permute.xlu0 %917
        %919 = vrot.lane.b32.xlu0 %v811, 32
        %v920 = vpop.permute.xlu0 %919
        %921 = vrot.lane.b32.xlu0 %v813, 32
        %v922 = vpop.permute.xlu0 %921
        %923 = vrot.lane.b32.xlu0 %v815, 32
        %v924 = vpop.permute.xlu0 %923
        %925 = vrot.lane.b32.xlu0 %v819, 32
        %v926 = vpop.permute.xlu0 %925
        %927 = vrot.lane.b32.xlu0 %v821, 32
        %v928 = vpop.permute.xlu0 %927
        %929 = vrot.lane.b32.xlu0 %v823, 32
        %v930 = vpop.permute.xlu0 %929
        %931 = vrot.lane.b32.xlu0 %v825, 32
        %v932 = vpop.permute.xlu0 %931
        %933 = vrot.lane.b32.xlu0 %v829, 32
        %v934 = vpop.permute.xlu0 %933
        %935 = vrot.lane.b32.xlu0 %v831, 32
        %v936 = vpop.permute.xlu0 %935
        %937 = vrot.lane.b32.xlu0 %v833, 32
        %v938 = vpop.permute.xlu0 %937
        %939 = vrot.lane.b32.xlu0 %v835, 32
        %v940 = vpop.permute.xlu0 %939
        %941 = vrot.lane.b32.xlu0 %v839, 32
        %v942 = vpop.permute.xlu0 %941
        %943 = vrot.lane.b32.xlu0 %v841, 32
        %v944 = vpop.permute.xlu0 %943
        %945 = vrot.lane.b32.xlu0 %v843, 32
        %v946 = vpop.permute.xlu0 %945
        %947 = vrot.lane.b32.xlu0 %v845, 32
        %v948 = vpop.permute.xlu0 %947
        %949 = vrot.lane.b32.xlu0 %v849, 32
        %v950 = vpop.permute.xlu0 %949
        %951 = vrot.lane.b32.xlu0 %v851, 32
        %v952 = vpop.permute.xlu0 %951
        %953 = vrot.lane.b32.xlu0 %v853, 32
        %v954 = vpop.permute.xlu0 %953
        %955 = vrot.lane.b32.xlu0 %v855, 32
        %v956 = vpop.permute.xlu0 %955
        %957 = vrot.lane.b32.xlu0 %v859, 32
        %v958 = vpop.permute.xlu0 %957
        %959 = vrot.lane.b32.xlu0 %v861, 32
        %v960 = vpop.permute.xlu0 %959
        %961 = vrot.lane.b32.xlu0 %v863, 32
        %v962 = vpop.permute.xlu0 %961
        %963 = vrot.lane.b32.xlu0 %v865, 32
        %v964 = vpop.permute.xlu0 %963
        %965 = vrot.lane.b32.xlu0 %v869, 32
        %v966 = vpop.permute.xlu0 %965
        %967 = vrot.lane.b32.xlu0 %v871, 32
        %v968 = vpop.permute.xlu0 %967
        %969 = vrot.lane.b32.xlu0 %v873, 32
        %v970 = vpop.permute.xlu0 %969
        %971 = vrot.lane.b32.xlu0 %v875, 32
        %v972 = vpop.permute.xlu0 %971
        %v973 = vsel %vm585, %v910, %v912
        %v974 = vsel %vm585, %v914, %v916
        %v975 = vsel %vm585, %v918, %v920
        %v976 = vsel %vm585, %v922, %v924
        %v977 = vsel %vm585, %v926, %v928
        %v978 = vsel %vm585, %v930, %v932
        %v979 = vsel %vm585, %v934, %v936
        %v980 = vsel %vm585, %v938, %v940
        %v981 = vsel %vm585, %v942, %v944
        %v982 = vsel %vm585, %v946, %v948
        %v983 = vsel %vm585, %v950, %v952
        %v984 = vsel %vm585, %v954, %v956
        %v985 = vsel %vm585, %v958, %v960
        %v986 = vsel %vm585, %v962, %v964
        %v987 = vsel %vm585, %v966, %v968
        %v988 = vsel %vm585, %v970, %v972
        %v1005 = vmax.f32 %v799, %v973
        %v1006 = vmax.f32 %v803, %v974
        %v1007 = vmax.f32 %v809, %v975
        %v1008 = vmax.f32 %v813, %v976
        %v1009 = vmax.f32 %v819, %v977
        %v1010 = vmax.f32 %v823, %v978
        %v1011 = vmax.f32 %v829, %v979
        %v1012 = vmax.f32 %v833, %v980
        %v1013 = vmax.f32 %v839, %v981
        %v1014 = vmax.f32 %v843, %v982
        %v1015 = vmax.f32 %v849, %v983
        %v1016 = vmax.f32 %v853, %v984
        %v1017 = vmax.f32 %v859, %v985
        %v1018 = vmax.f32 %v863, %v986
        %v1019 = vmax.f32 %v869, %v987
        %v1020 = vmax.f32 %v873, %v988
        %1021 = vrot.lane.b32.xlu0 %v415, 96
        %v1022 = vpop.permute.xlu0 %1021
        %1023 = vrot.lane.b32.xlu0 %v417, 96
        %v1024 = vpop.permute.xlu0 %1023
        %1025 = vrot.lane.b32.xlu0 %v419, 96
        %v1026 = vpop.permute.xlu0 %1025
        %1027 = vrot.lane.b32.xlu0 %v421, 96
        %v1028 = vpop.permute.xlu0 %1027
        %1029 = vrot.lane.b32.xlu0 %v423, 96
        %v1030 = vpop.permute.xlu0 %1029
        %1031 = vrot.lane.b32.xlu0 %v425, 96
        %v1032 = vpop.permute.xlu0 %1031
        %1033 = vrot.lane.b32.xlu0 %v427, 96
        %v1034 = vpop.permute.xlu0 %1033
        %1035 = vrot.lane.b32.xlu0 %v429, 96
        %v1036 = vpop.permute.xlu0 %1035
        %1037 = vrot.lane.b32.xlu0 %v443, 32
        %v1038 = vpop.permute.xlu0 %1037
        %1039 = vrot.lane.b32.xlu0 %v455, 32
        %v1040 = vpop.permute.xlu0 %1039
        %1041 = vrot.lane.b32.xlu0 %v467, 32
        %v1042 = vpop.permute.xlu0 %1041
        %1043 = vrot.lane.b32.xlu0 %v479, 32
        %v1044 = vpop.permute.xlu0 %1043
        %1045 = vrot.lane.b32.xlu0 %v491, 32
        %v1046 = vpop.permute.xlu0 %1045
        %1047 = vrot.lane.b32.xlu0 %v503, 32
        %v1048 = vpop.permute.xlu0 %1047
        %1049 = vrot.lane.b32.xlu0 %v515, 32
        %v1050 = vpop.permute.xlu0 %1049
        %1051 = vrot.lane.b32.xlu0 %v527, 32
        %v1052 = vpop.permute.xlu0 %1051
        %1053 = vrot.lane.b32.xlu0 %v563, 96
        %v1054 = vpop.permute.xlu0 %1053
        %1055 = vrot.lane.b32.xlu0 %v566, 96
        %v1056 = vpop.permute.xlu0 %1055
        %1057 = vrot.lane.b32.xlu0 %v569, 96
        %v1058 = vpop.permute.xlu0 %1057
        %1059 = vrot.lane.b32.xlu0 %v572, 96
        %v1060 = vpop.permute.xlu0 %1059
        %1061 = vrot.lane.b32.xlu0 %v575, 96
        %v1062 = vpop.permute.xlu0 %1061
        %1063 = vrot.lane.b32.xlu0 %v578, 96
        %v1064 = vpop.permute.xlu0 %1063
        %1065 = vrot.lane.b32.xlu0 %v581, 96
        %v1066 = vpop.permute.xlu0 %1065
        %1067 = vrot.lane.b32.xlu0 %v584, 96
        %v1068 = vpop.permute.xlu0 %1067
        %v1071 = vsel %vm585, %v1022, %v1038
        %v1074 = vsel %vm585, %v1024, %v1040
        %v1077 = vsel %vm585, %v1026, %v1042
        %v1080 = vsel %vm585, %v1028, %v1044
        %v1083 = vsel %vm585, %v1030, %v1046
        %v1086 = vsel %vm585, %v1032, %v1048
        %v1089 = vsel %vm585, %v1034, %v1050
        %v1092 = vsel %vm585, %v1036, %v1052
        %v1093 = vsel %vm586, %v1071, %v1038
        %v1094 = vsel %vm586, %v1074, %v1040
        %v1095 = vsel %vm586, %v1077, %v1042
        %v1096 = vsel %vm586, %v1080, %v1044
        %v1097 = vsel %vm586, %v1083, %v1046
        %v1098 = vsel %vm586, %v1086, %v1048
        %v1099 = vsel %vm586, %v1089, %v1050
        %v1100 = vsel %vm586, %v1092, %v1052
        %v1102 = vsel %vm603, %v1093, %v1054
        %v1105 = vsel %vm603, %v1094, %v1056
        %v1108 = vsel %vm603, %v1095, %v1058
        %v1111 = vsel %vm603, %v1096, %v1060
        %v1114 = vsel %vm603, %v1097, %v1062
        %v1117 = vsel %vm603, %v1098, %v1064
        %v1120 = vsel %vm603, %v1099, %v1066
        %v1123 = vsel %vm603, %v1100, %v1068
        %v1125 = vsel %vm585, %v1054, 0
        %v1127 = vsel %vm585, %v1056, 0
        %v1129 = vsel %vm585, %v1058, 0
        %v1131 = vsel %vm585, %v1060, 0
        %v1133 = vsel %vm585, %v1062, 0
        %v1135 = vsel %vm585, %v1064, 0
        %v1137 = vsel %vm585, %v1066, 0
        %v1139 = vsel %vm585, %v1068, 0
        %1141 = vmatprep.subr.bf16.mxu0 %v715
        %1142 = vmatpush1.bf16.msra.mxu0 %v714
        %1143 = vmatprep.subr.bf16.mxu0 %v713
        %1144 = vmatpush1.bf16.msra.mxu0 %v712
        %1145 = vmatprep.subr.bf16.mxu0 %v711
        %1146 = vmatpush1.bf16.msra.mxu0 %v710
        %1147 = vmatprep.subr.bf16.mxu0 %v709
        %1148 = vmatpush1.bf16.msra.mxu0 %v708
        %1149 = vmatprep.subr.bf16.mxu0 %v707
        %1150 = vmatpush1.bf16.msra.mxu0 %v706
        %1151 = vmatprep.subr.bf16.mxu0 %v705
        %1152 = vmatpush1.bf16.msra.mxu0 %v704
        %1153 = vmatprep.subr.bf16.mxu0 %v703
        %1154 = vmatpush1.bf16.msra.mxu0 %v702
        %1155 = vmatprep.subr.bf16.mxu0 %v701
        %1156 = vmatpush1.bf16.msra.mxu0 %v700
        %1157 = vmatprep.subr.bf16.mxu0 0
        %1158 = vmatpush2.bf16.msra.mxu0 0
        %1159 = vmatprep.subr.bf16.mxu0 0
        %1160 = vmatpush2.bf16.msra.mxu0 0
        %1161 = vmatprep.subr.bf16.mxu0 0
        %1162 = vmatpush2.bf16.msra.mxu0 0
        %1163 = vmatprep.subr.bf16.mxu0 0
        %1164 = vmatpush2.bf16.msra.mxu0 0
        %1165 = vmatprep.subr.bf16.mxu0 0
        %1166 = vmatpush2.bf16.msra.mxu0 0
        %1167 = vmatprep.subr.bf16.mxu0 0
        %1168 = vmatpush2.bf16.msra.mxu0 0
        %1169 = vmatprep.subr.bf16.mxu0 %v719
        %1170 = vmatpush2.bf16.msra.mxu0 %v718
        %1171 = vmatprep.subr.bf16.mxu0 %v717
        %1172 = vmatpush2.bf16.msra.mxu0 %v716
        %1173 = vmatprep.mubr.bf16.mxu0 %v1125
        %1174 = vmatmul.mubr.bf16.gmra.mxu0 %v1102
        %v1175 = vpop.f32.mrf.mxu0
        %v1176 = vadd.f32 0.0, %v1175
        %v1177 = vpop.f32.mrf.mxu0
        %v1178 = vadd.f32 0.0, %v1177
        %v1179 = vpop.f32.mrf.mxu0
        %v1180 = vadd.f32 0.0, %v1179
        %v1181 = vpop.f32.mrf.mxu0
        %v1182 = vadd.f32 0.0, %v1181
        %1183 = vmatprep.mubr.bf16.mxu0 %v1127
        %1184 = vmatmul.mubr.bf16.gmra.mxu0 %v1105
        %v1185 = vpop.f32.mrf.mxu0
        %v1186 = vadd.f32 0.0, %v1185
        %v1187 = vpop.f32.mrf.mxu0
        %v1188 = vadd.f32 0.0, %v1187
        %v1189 = vpop.f32.mrf.mxu0
        %v1190 = vadd.f32 0.0, %v1189
        %v1191 = vpop.f32.mrf.mxu0
        %v1192 = vadd.f32 0.0, %v1191
        %1193 = vmatprep.mubr.bf16.mxu0 %v1129
        %1194 = vmatmul.mubr.bf16.gmra.mxu0 %v1108
        %v1195 = vpop.f32.mrf.mxu0
        %v1196 = vadd.f32 0.0, %v1195
        %v1197 = vpop.f32.mrf.mxu0
        %v1198 = vadd.f32 0.0, %v1197
        %v1199 = vpop.f32.mrf.mxu0
        %v1200 = vadd.f32 0.0, %v1199
        %v1201 = vpop.f32.mrf.mxu0
        %v1202 = vadd.f32 0.0, %v1201
        %1203 = vmatprep.mubr.bf16.mxu0 %v1131
        %1204 = vmatmul.mubr.bf16.gmra.mxu0 %v1111
        %v1205 = vpop.f32.mrf.mxu0
        %v1206 = vadd.f32 0.0, %v1205
        %v1207 = vpop.f32.mrf.mxu0
        %v1208 = vadd.f32 0.0, %v1207
        %v1209 = vpop.f32.mrf.mxu0
        %v1210 = vadd.f32 0.0, %v1209
        %v1211 = vpop.f32.mrf.mxu0
        %v1212 = vadd.f32 0.0, %v1211
        %1213 = vmatprep.mubr.bf16.mxu0 %v1133
        %1214 = vmatmul.mubr.bf16.gmra.mxu0 %v1114
        %v1215 = vpop.f32.mrf.mxu0
        %v1216 = vadd.f32 0.0, %v1215
        %v1217 = vpop.f32.mrf.mxu0
        %v1218 = vadd.f32 0.0, %v1217
        %v1219 = vpop.f32.mrf.mxu0
        %v1220 = vadd.f32 0.0, %v1219
        %v1221 = vpop.f32.mrf.mxu0
        %v1222 = vadd.f32 0.0, %v1221
        %1223 = vmatprep.mubr.bf16.mxu0 %v1135
        %1224 = vmatmul.mubr.bf16.gmra.mxu0 %v1117
        %v1225 = vpop.f32.mrf.mxu0
        %v1226 = vadd.f32 0.0, %v1225
        %v1227 = vpop.f32.mrf.mxu0
        %v1228 = vadd.f32 0.0, %v1227
        %v1229 = vpop.f32.mrf.mxu0
        %v1230 = vadd.f32 0.0, %v1229
        %v1231 = vpop.f32.mrf.mxu0
        %v1232 = vadd.f32 0.0, %v1231
        %1233 = vmatprep.mubr.bf16.mxu0 %v1137
        %1234 = vmatmul.mubr.bf16.gmra.mxu0 %v1120
        %v1235 = vpop.f32.mrf.mxu0
        %v1236 = vadd.f32 0.0, %v1235
        %v1237 = vpop.f32.mrf.mxu0
        %v1238 = vadd.f32 0.0, %v1237
        %v1239 = vpop.f32.mrf.mxu0
        %v1240 = vadd.f32 0.0, %v1239
        %v1241 = vpop.f32.mrf.mxu0
        %v1242 = vadd.f32 0.0, %v1241
        %1243 = vmatprep.mubr.bf16.mxu0 %v1139
        %1244 = vmatmul.mubr.bf16.gmra.mxu0 %v1123
        %v1245 = vpop.f32.mrf.mxu0
        %v1246 = vadd.f32 0.0, %v1245
        %v1247 = vpop.f32.mrf.mxu0
        %v1248 = vadd.f32 0.0, %v1247
        %v1249 = vpop.f32.mrf.mxu0
        %v1250 = vadd.f32 0.0, %v1249
        %v1251 = vpop.f32.mrf.mxu0
        %v1252 = vadd.f32 0.0, %v1251
        %1253 = vdwg.mxu0
        %1286 = vrot.lane.b32.xlu0 %v1176, 32
        %v1287 = vpop.permute.xlu0 %1286
        %1288 = vrot.lane.b32.xlu0 %v1178, 32
        %v1289 = vpop.permute.xlu0 %1288
        %1290 = vrot.lane.b32.xlu0 %v1180, 32
        %v1291 = vpop.permute.xlu0 %1290
        %1292 = vrot.lane.b32.xlu0 %v1182, 32
        %v1293 = vpop.permute.xlu0 %1292
        %1294 = vrot.lane.b32.xlu0 %v1186, 32
        %v1295 = vpop.permute.xlu0 %1294
        %1296 = vrot.lane.b32.xlu0 %v1188, 32
        %v1297 = vpop.permute.xlu0 %1296
        %1298 = vrot.lane.b32.xlu0 %v1190, 32
        %v1299 = vpop.permute.xlu0 %1298
        %1300 = vrot.lane.b32.xlu0 %v1192, 32
        %v1301 = vpop.permute.xlu0 %1300
        %1302 = vrot.lane.b32.xlu0 %v1196, 32
        %v1303 = vpop.permute.xlu0 %1302
        %1304 = vrot.lane.b32.xlu0 %v1198, 32
        %v1305 = vpop.permute.xlu0 %1304
        %1306 = vrot.lane.b32.xlu0 %v1200, 32
        %v1307 = vpop.permute.xlu0 %1306
        %1308 = vrot.lane.b32.xlu0 %v1202, 32
        %v1309 = vpop.permute.xlu0 %1308
        %1310 = vrot.lane.b32.xlu0 %v1206, 32
        %v1311 = vpop.permute.xlu0 %1310
        %1312 = vrot.lane.b32.xlu0 %v1208, 32
        %v1313 = vpop.permute.xlu0 %1312
        %1314 = vrot.lane.b32.xlu0 %v1210, 32
        %v1315 = vpop.permute.xlu0 %1314
        %1316 = vrot.lane.b32.xlu0 %v1212, 32
        %v1317 = vpop.permute.xlu0 %1316
        %1318 = vrot.lane.b32.xlu0 %v1216, 32
        %v1319 = vpop.permute.xlu0 %1318
        %1320 = vrot.lane.b32.xlu0 %v1218, 32
        %v1321 = vpop.permute.xlu0 %1320
        %1322 = vrot.lane.b32.xlu0 %v1220, 32
        %v1323 = vpop.permute.xlu0 %1322
        %1324 = vrot.lane.b32.xlu0 %v1222, 32
        %v1325 = vpop.permute.xlu0 %1324
        %1326 = vrot.lane.b32.xlu0 %v1226, 32
        %v1327 = vpop.permute.xlu0 %1326
        %1328 = vrot.lane.b32.xlu0 %v1228, 32
        %v1329 = vpop.permute.xlu0 %1328
        %1330 = vrot.lane.b32.xlu0 %v1230, 32
        %v1331 = vpop.permute.xlu0 %1330
        %1332 = vrot.lane.b32.xlu0 %v1232, 32
        %v1333 = vpop.permute.xlu0 %1332
        %1334 = vrot.lane.b32.xlu0 %v1236, 32
        %v1335 = vpop.permute.xlu0 %1334
        %1336 = vrot.lane.b32.xlu0 %v1238, 32
        %v1337 = vpop.permute.xlu0 %1336
        %1338 = vrot.lane.b32.xlu0 %v1240, 32
        %v1339 = vpop.permute.xlu0 %1338
        %1340 = vrot.lane.b32.xlu0 %v1242, 32
        %v1341 = vpop.permute.xlu0 %1340
        %1342 = vrot.lane.b32.xlu0 %v1246, 32
        %v1343 = vpop.permute.xlu0 %1342
        %1344 = vrot.lane.b32.xlu0 %v1248, 32
        %v1345 = vpop.permute.xlu0 %1344
        %1346 = vrot.lane.b32.xlu0 %v1250, 32
        %v1347 = vpop.permute.xlu0 %1346
        %1348 = vrot.lane.b32.xlu0 %v1252, 32
        %v1349 = vpop.permute.xlu0 %1348
        %v1350 = vsel %vm585, %v1287, %v1289
        %v1351 = vsel %vm585, %v1291, %v1293
        %v1352 = vsel %vm585, %v1295, %v1297
        %v1353 = vsel %vm585, %v1299, %v1301
        %v1354 = vsel %vm585, %v1303, %v1305
        %v1355 = vsel %vm585, %v1307, %v1309
        %v1356 = vsel %vm585, %v1311, %v1313
        %v1357 = vsel %vm585, %v1315, %v1317
        %v1358 = vsel %vm585, %v1319, %v1321
        %v1359 = vsel %vm585, %v1323, %v1325
        %v1360 = vsel %vm585, %v1327, %v1329
        %v1361 = vsel %vm585, %v1331, %v1333
        %v1362 = vsel %vm585, %v1335, %v1337
        %v1363 = vsel %vm585, %v1339, %v1341
        %v1364 = vsel %vm585, %v1343, %v1345
        %v1365 = vsel %vm585, %v1347, %v1349
        %v1382 = vmax.f32 %v1176, %v1350
        %v1383 = vmax.f32 %v1180, %v1351
        %v1384 = vmax.f32 %v1186, %v1352
        %v1385 = vmax.f32 %v1190, %v1353
        %v1386 = vmax.f32 %v1196, %v1354
        %v1387 = vmax.f32 %v1200, %v1355
        %v1388 = vmax.f32 %v1206, %v1356
        %v1389 = vmax.f32 %v1210, %v1357
        %v1390 = vmax.f32 %v1216, %v1358
        %v1391 = vmax.f32 %v1220, %v1359
        %v1392 = vmax.f32 %v1226, %v1360
        %v1393 = vmax.f32 %v1230, %v1361
        %v1394 = vmax.f32 %v1236, %v1362
        %v1395 = vmax.f32 %v1240, %v1363
        %v1396 = vmax.f32 %v1246, %v1364
        %v1397 = vmax.f32 %v1250, %v1365
        %v1398 = vmax.f32 %v1005, %v1382
        %v1399 = vmax.f32 %v1006, %v1383
        %v1400 = vmax.f32 %v1007, %v1384
        %v1401 = vmax.f32 %v1008, %v1385
        %v1402 = vmax.f32 %v1009, %v1386
        %v1403 = vmax.f32 %v1010, %v1387
        %v1404 = vmax.f32 %v1011, %v1388
        %v1405 = vmax.f32 %v1012, %v1389
        %v1406 = vmax.f32 %v1013, %v1390
        %v1407 = vmax.f32 %v1014, %v1391
        %v1408 = vmax.f32 %v1015, %v1392
        %v1409 = vmax.f32 %v1016, %v1393
        %v1410 = vmax.f32 %v1017, %v1394
        %v1411 = vmax.f32 %v1018, %v1395
        %v1412 = vmax.f32 %v1019, %v1396
        %v1413 = vmax.f32 %v1020, %v1397
        %v1414 = vld [vmem:[%s6] sm:$0x1]
        %v1416 = vlaneseq
        %v1417 = vshrl.u32 %v1416, 7
        %v1418 = vsub.s32 0, %v1417
        %v1419 = vrot.slane %v1414, %v1418
        %v1421 = vadd.f32 %v1398, %v1419
        %v1422 = vadd.f32 %v1399, %v1419
        %v1423 = vadd.f32 %v1400, %v1419
        %v1424 = vadd.f32 %v1401, %v1419
        %v1425 = vadd.f32 %v1402, %v1419
        %v1426 = vadd.f32 %v1403, %v1419
        %v1427 = vadd.f32 %v1404, %v1419
        %v1428 = vadd.f32 %v1405, %v1419
        %v1429 = vadd.f32 %v1406, %v1419
        %v1430 = vadd.f32 %v1407, %v1419
        %v1431 = vadd.f32 %v1408, %v1419
        %v1432 = vadd.f32 %v1409, %v1419
        %v1433 = vadd.f32 %v1410, %v1419
        %v1434 = vadd.f32 %v1411, %v1419
        %v1435 = vadd.f32 %v1412, %v1419
        %v1436 = vadd.f32 %v1413, %v1419
        %v1437 = vmax.f32 %v1421, 0.0
        %v1438 = vmax.f32 %v1422, 0.0
        %v1439 = vmax.f32 %v1423, 0.0
        %v1440 = vmax.f32 %v1424, 0.0
        %v1441 = vmax.f32 %v1425, 0.0
        %v1442 = vmax.f32 %v1426, 0.0
        %v1443 = vmax.f32 %v1427, 0.0
        %v1444 = vmax.f32 %v1428, 0.0
        %v1445 = vmax.f32 %v1429, 0.0
        %v1446 = vmax.f32 %v1430, 0.0
        %v1447 = vmax.f32 %v1431, 0.0
        %v1448 = vmax.f32 %v1432, 0.0
        %v1449 = vmax.f32 %v1433, 0.0
        %v1450 = vmax.f32 %v1434, 0.0
        %v1451 = vmax.f32 %v1435, 0.0
        %v1452 = vmax.f32 %v1436, 0.0
        %v1453 = vpack.c.bf16 %v1438, %v1437
        %v1454 = vpack.c.bf16 %v1440, %v1439
        %v1455 = vpack.c.bf16 %v1442, %v1441
        %v1456 = vpack.c.bf16 %v1444, %v1443
        %v1457 = vpack.c.bf16 %v1446, %v1445
        %v1458 = vpack.c.bf16 %v1448, %v1447
        %v1459 = vpack.c.bf16 %v1450, %v1449
        %v1460 = vpack.c.bf16 %v1452, %v1451
        %v1462 = vshrl.u32 %v1453, 16
        %v1464 = vshll.u32 %v1453, 16
        %v1466 = vrot.slane %v1464, 1
        %v1467 = vor.u32 %v1462, %v1466
        %v1469 = vshrl.u32 %v1454, 16
        %v1471 = vshll.u32 %v1454, 16
        %v1473 = vrot.slane %v1471, 1
        %v1474 = vor.u32 %v1469, %v1473
        %v1476 = vshrl.u32 %v1455, 16
        %v1478 = vshll.u32 %v1455, 16
        %v1480 = vrot.slane %v1478, 1
        %v1481 = vor.u32 %v1476, %v1480
        %v1483 = vshrl.u32 %v1456, 16
        %v1485 = vshll.u32 %v1456, 16
        %v1487 = vrot.slane %v1485, 1
        %v1488 = vor.u32 %v1483, %v1487
        %v1490 = vshrl.u32 %v1457, 16
        %v1492 = vshll.u32 %v1457, 16
        %v1494 = vrot.slane %v1492, 1
        %v1495 = vor.u32 %v1490, %v1494
        %v1497 = vshrl.u32 %v1458, 16
        %v1499 = vshll.u32 %v1458, 16
        %v1501 = vrot.slane %v1499, 1
        %v1502 = vor.u32 %v1497, %v1501
        %v1504 = vshrl.u32 %v1459, 16
        %v1506 = vshll.u32 %v1459, 16
        %v1508 = vrot.slane %v1506, 1
        %v1509 = vor.u32 %v1504, %v1508
        %v1511 = vshrl.u32 %v1460, 16
        %v1513 = vshll.u32 %v1460, 16
        %v1515 = vrot.slane %v1513, 1
        %v1516 = vor.u32 %v1511, %v1515
        %1517 = vrot.lane.b32.xlu0 %v1467, 96
        %v1518 = vpop.permute.xlu0 %1517
        %1519 = vrot.lane.b32.xlu0 %v1474, 96
        %v1520 = vpop.permute.xlu0 %1519
        %1521 = vrot.lane.b32.xlu0 %v1481, 96
        %v1522 = vpop.permute.xlu0 %1521
        %1523 = vrot.lane.b32.xlu0 %v1488, 96
        %v1524 = vpop.permute.xlu0 %1523
        %1525 = vrot.lane.b32.xlu0 %v1495, 96
        %v1526 = vpop.permute.xlu0 %1525
        %1527 = vrot.lane.b32.xlu0 %v1502, 96
        %v1528 = vpop.permute.xlu0 %1527
        %1529 = vrot.lane.b32.xlu0 %v1509, 96
        %v1530 = vpop.permute.xlu0 %1529
        %1531 = vrot.lane.b32.xlu0 %v1516, 96
        %v1532 = vpop.permute.xlu0 %1531
        %v1541 = vrot.slane %v1453, 1
        %v1542 = vrot.slane %v1454, 1
        %v1543 = vrot.slane %v1455, 1
        %v1544 = vrot.slane %v1456, 1
        %v1545 = vrot.slane %v1457, 1
        %v1546 = vrot.slane %v1458, 1
        %v1547 = vrot.slane %v1459, 1
        %v1548 = vrot.slane %v1460, 1
        %1549 = vrot.lane.b32.xlu0 %v1541, 64
        %v1550 = vpop.permute.xlu0 %1549
        %1551 = vrot.lane.b32.xlu0 %v1542, 64
        %v1552 = vpop.permute.xlu0 %1551
        %1553 = vrot.lane.b32.xlu0 %v1543, 64
        %v1554 = vpop.permute.xlu0 %1553
        %1555 = vrot.lane.b32.xlu0 %v1544, 64
        %v1556 = vpop.permute.xlu0 %1555
        %1557 = vrot.lane.b32.xlu0 %v1545, 64
        %v1558 = vpop.permute.xlu0 %1557
        %1559 = vrot.lane.b32.xlu0 %v1546, 64
        %v1560 = vpop.permute.xlu0 %1559
        %1561 = vrot.lane.b32.xlu0 %v1547, 64
        %v1562 = vpop.permute.xlu0 %1561
        %1563 = vrot.lane.b32.xlu0 %v1548, 64
        %v1564 = vpop.permute.xlu0 %1563
        %v1565 = vrot.slane %v1462, 1
        %v1566 = vrot.slane %v1464, 2
        %v1567 = vor.u32 %v1565, %v1566
        %v1568 = vrot.slane %v1469, 1
        %v1569 = vrot.slane %v1471, 2
        %v1570 = vor.u32 %v1568, %v1569
        %v1571 = vrot.slane %v1476, 1
        %v1572 = vrot.slane %v1478, 2
        %v1573 = vor.u32 %v1571, %v1572
        %v1574 = vrot.slane %v1483, 1
        %v1575 = vrot.slane %v1485, 2
        %v1576 = vor.u32 %v1574, %v1575
        %v1577 = vrot.slane %v1490, 1
        %v1578 = vrot.slane %v1492, 2
        %v1579 = vor.u32 %v1577, %v1578
        %v1580 = vrot.slane %v1497, 1
        %v1581 = vrot.slane %v1499, 2
        %v1582 = vor.u32 %v1580, %v1581
        %v1583 = vrot.slane %v1504, 1
        %v1584 = vrot.slane %v1506, 2
        %v1585 = vor.u32 %v1583, %v1584
        %v1586 = vrot.slane %v1511, 1
        %v1587 = vrot.slane %v1513, 2
        %v1588 = vor.u32 %v1586, %v1587
        %1589 = vrot.lane.b32.xlu0 %v1567, 32
        %v1590 = vpop.permute.xlu0 %1589
        %1591 = vrot.lane.b32.xlu0 %v1570, 32
        %v1592 = vpop.permute.xlu0 %1591
        %1593 = vrot.lane.b32.xlu0 %v1573, 32
        %v1594 = vpop.permute.xlu0 %1593
        %1595 = vrot.lane.b32.xlu0 %v1576, 32
        %v1596 = vpop.permute.xlu0 %1595
        %1597 = vrot.lane.b32.xlu0 %v1579, 32
        %v1598 = vpop.permute.xlu0 %1597
        %1599 = vrot.lane.b32.xlu0 %v1582, 32
        %v1600 = vpop.permute.xlu0 %1599
        %1601 = vrot.lane.b32.xlu0 %v1585, 32
        %v1602 = vpop.permute.xlu0 %1601
        %1603 = vrot.lane.b32.xlu0 %v1588, 32
        %v1604 = vpop.permute.xlu0 %1603
        %v1605 = vrot.slane %v1453, 2
        %v1606 = vrot.slane %v1454, 2
        %v1607 = vrot.slane %v1455, 2
        %v1608 = vrot.slane %v1456, 2
        %v1609 = vrot.slane %v1457, 2
        %v1610 = vrot.slane %v1458, 2
        %v1611 = vrot.slane %v1459, 2
        %v1612 = vrot.slane %v1460, 2
        %v1614 = vsel %vm603, %v1453, %v1518
        %v1616 = vsel %vm603, %v1454, %v1520
        %v1618 = vsel %vm603, %v1455, %v1522
        %v1620 = vsel %vm603, %v1456, %v1524
        %v1622 = vsel %vm603, %v1457, %v1526
        %v1624 = vsel %vm603, %v1458, %v1528
        %v1626 = vsel %vm603, %v1459, %v1530
        %v1628 = vsel %vm603, %v1460, %v1532
        %v1630 = vsel %vm586, %v1518, %v1550
        %v1632 = vsel %vm586, %v1520, %v1552
        %v1634 = vsel %vm586, %v1522, %v1554
        %v1636 = vsel %vm586, %v1524, %v1556
        %v1638 = vsel %vm586, %v1526, %v1558
        %v1640 = vsel %vm586, %v1528, %v1560
        %v1642 = vsel %vm586, %v1530, %v1562
        %v1644 = vsel %vm586, %v1532, %v1564
        %v1646 = vsel %vm585, %v1550, %v1590
        %v1648 = vsel %vm585, %v1552, %v1592
        %v1650 = vsel %vm585, %v1554, %v1594
        %v1652 = vsel %vm585, %v1556, %v1596
        %v1654 = vsel %vm585, %v1558, %v1598
        %v1656 = vsel %vm585, %v1560, %v1600
        %v1658 = vsel %vm585, %v1562, %v1602
        %v1660 = vsel %vm585, %v1564, %v1604
        %v1685 = vunpack.c.l.b16 %v1614
        %v1686 = vunpack.c.l.b16 %v1630
        %v1687 = vunpack.c.l.b16 %v1646
        %v1688 = vunpack.c.l.b16 %v1605
        %v1689 = vunpack.c.l.b16 %v1616
        %v1690 = vunpack.c.l.b16 %v1632
        %v1691 = vunpack.c.l.b16 %v1648
        %v1692 = vunpack.c.l.b16 %v1606
        %v1693 = vunpack.c.l.b16 %v1618
        %v1694 = vunpack.c.l.b16 %v1634
        %v1695 = vunpack.c.l.b16 %v1650
        %v1696 = vunpack.c.l.b16 %v1607
        %v1697 = vunpack.c.l.b16 %v1620
        %v1698 = vunpack.c.l.b16 %v1636
        %v1699 = vunpack.c.l.b16 %v1652
        %v1700 = vunpack.c.l.b16 %v1608
        %v1701 = vunpack.c.l.b16 %v1622
        %v1702 = vunpack.c.l.b16 %v1638
        %v1703 = vunpack.c.l.b16 %v1654
        %v1704 = vunpack.c.l.b16 %v1609
        %v1705 = vunpack.c.l.b16 %v1624
        %v1706 = vunpack.c.l.b16 %v1640
        %v1707 = vunpack.c.l.b16 %v1656
        %v1708 = vunpack.c.l.b16 %v1610
        %v1709 = vunpack.c.l.b16 %v1626
        %v1710 = vunpack.c.l.b16 %v1642
        %v1711 = vunpack.c.l.b16 %v1658
        %v1712 = vunpack.c.l.b16 %v1611
        %v1713 = vunpack.c.l.b16 %v1628
        %v1714 = vunpack.c.l.b16 %v1644
        %v1715 = vunpack.c.l.b16 %v1660
        %v1716 = vunpack.c.l.b16 %v1612
        %v1717 = vld [vmem:[%s2] sm:$0xf]
        %v1718 = vld [vmem:[%s2 + $0x4] sm:$0xf]
        %v1719 = vld [vmem:[%s2 + $0x8] sm:$0xf]
        %v1720 = vld [vmem:[%s2 + $0xc] sm:$0xf]
        %v1721 = vld [vmem:[%s2 + $0x10] sm:$0xf]
        %v1722 = vld [vmem:[%s2 + $0x14] sm:$0xf]
        %v1723 = vld [vmem:[%s2 + $0x18] sm:$0xf]
        %v1724 = vld [vmem:[%s2 + $0x1c] sm:$0xf]
        %v1725 = vld [vmem:[%s2 + $0x20] sm:$0xf]
        %v1726 = vld [vmem:[%s2 + $0x24] sm:$0xf]
        %v1727 = vld [vmem:[%s2 + $0x28] sm:$0xf]
        %v1728 = vld [vmem:[%s2 + $0x2c] sm:$0xf]
        %v1729 = vld [vmem:[%s2 + $0x30] sm:$0xf]
        %v1730 = vld [vmem:[%s2 + $0x34] sm:$0xf]
        %v1731 = vld [vmem:[%s2 + $0x38] sm:$0xf]
        %v1732 = vld [vmem:[%s2 + $0x3c] sm:$0xf]
        %v1733 = vld [vmem:[%s2 + $0x40] sm:$0xf]
        %v1734 = vld [vmem:[%s2 + $0x44] sm:$0xf]
        %v1735 = vld [vmem:[%s2 + $0x48] sm:$0xf]
        %v1736 = vld [vmem:[%s2 + $0x4c] sm:$0xf]
        %v1737 = vld [vmem:[%s2 + $0x50] sm:$0xf]
        %v1738 = vld [vmem:[%s2 + $0x54] sm:$0xf]
        %v1739 = vld [vmem:[%s2 + $0x58] sm:$0xf]
        %v1740 = vld [vmem:[%s2 + $0x5c] sm:$0xf]
        %v1741 = vld [vmem:[%s2 + $0x60] sm:$0xf]
        %v1742 = vld [vmem:[%s2 + $0x64] sm:$0xf]
        %v1743 = vld [vmem:[%s2 + $0x68] sm:$0xf]
        %v1744 = vld [vmem:[%s2 + $0x6c] sm:$0xf]
        %v1745 = vld [vmem:[%s2 + $0x70] sm:$0xf]
        %v1746 = vld [vmem:[%s2 + $0x74] sm:$0xf]
        %v1747 = vld [vmem:[%s2 + $0x78] sm:$0xf]
        %v1748 = vld [vmem:[%s2 + $0x7c] sm:$0xf]
        %v1749 = vld [vmem:[%s2 + $0x80] sm:$0xf]
        %v1750 = vld [vmem:[%s2 + $0x84] sm:$0xf]
        %v1751 = vld [vmem:[%s2 + $0x88] sm:$0xf]
        %v1752 = vld [vmem:[%s2 + $0x8c] sm:$0xf]
        %v1753 = vld [vmem:[%s2 + $0x90] sm:$0xf]
        %v1754 = vld [vmem:[%s2 + $0x94] sm:$0xf]
        %v1755 = vld [vmem:[%s2 + $0x98] sm:$0xf]
        %v1756 = vld [vmem:[%s2 + $0x9c] sm:$0xf]
        %v1757 = vld [vmem:[%s2 + $0xa0] sm:$0xf]
        %v1758 = vld [vmem:[%s2 + $0xa4] sm:$0xf]
        %v1759 = vld [vmem:[%s2 + $0xa8] sm:$0xf]
        %v1760 = vld [vmem:[%s2 + $0xac] sm:$0xf]
        %v1761 = vld [vmem:[%s2 + $0xb0] sm:$0xf]
        %v1762 = vld [vmem:[%s2 + $0xb4] sm:$0xf]
        %v1763 = vld [vmem:[%s2 + $0xb8] sm:$0xf]
        %v1764 = vld [vmem:[%s2 + $0xbc] sm:$0xf]
        %v1765 = vld [vmem:[%s2 + $0xc0] sm:$0xf]
        %v1766 = vld [vmem:[%s2 + $0xc4] sm:$0xf]
        %v1767 = vld [vmem:[%s2 + $0xc8] sm:$0xf]
        %v1768 = vld [vmem:[%s2 + $0xcc] sm:$0xf]
        %v1769 = vld [vmem:[%s2 + $0xd0] sm:$0xf]
        %v1770 = vld [vmem:[%s2 + $0xd4] sm:$0xf]
        %v1771 = vld [vmem:[%s2 + $0xd8] sm:$0xf]
        %v1772 = vld [vmem:[%s2 + $0xdc] sm:$0xf]
        %v1773 = vld [vmem:[%s2 + $0xe0] sm:$0xf]
        %v1774 = vld [vmem:[%s2 + $0xe4] sm:$0xf]
        %v1775 = vld [vmem:[%s2 + $0xe8] sm:$0xf]
        %v1776 = vld [vmem:[%s2 + $0xec] sm:$0xf]
        %v1777 = vpack.c.b16 %v1689, %v1685
        %v1778 = vpack.c.b16 %v1690, %v1686
        %v1779 = vpack.c.b16 %v1691, %v1687
        %v1780 = vpack.c.b16 %v1692, %v1688
        %v1781 = vpack.c.b16 %v1697, %v1693
        %v1782 = vpack.c.b16 %v1698, %v1694
        %v1783 = vpack.c.b16 %v1699, %v1695
        %v1784 = vpack.c.b16 %v1700, %v1696
        %v1785 = vpack.c.b16 %v1705, %v1701
        %v1786 = vpack.c.b16 %v1706, %v1702
        %v1787 = vpack.c.b16 %v1707, %v1703
        %v1788 = vpack.c.b16 %v1708, %v1704
        %v1789 = vpack.c.b16 %v1713, %v1709
        %v1790 = vpack.c.b16 %v1714, %v1710
        %v1791 = vpack.c.b16 %v1715, %v1711
        %v1792 = vpack.c.b16 %v1716, %v1712
        %v1865 = vunpack.c.l.b16 %v1717
        %v1866 = vunpack.c.l.b16 %v1718
        %v1867 = vunpack.c.l.b16 %v1719
        %v1868 = vunpack.c.l.b16 %v1720
        %v1869 = vunpack.c.l.b16 %v1721
        %v1870 = vunpack.c.l.b16 %v1722
        %v1871 = vunpack.c.l.b16 %v1723
        %v1872 = vunpack.c.l.b16 %v1724
        %v1873 = vunpack.c.l.b16 %v1725
        %v1874 = vunpack.c.l.b16 %v1726
        %v1875 = vunpack.c.l.b16 %v1727
        %v1876 = vunpack.c.l.b16 %v1728
        %v1877 = vunpack.c.l.b16 %v1729
        %v1878 = vunpack.c.l.b16 %v1730
        %v1879 = vunpack.c.l.b16 %v1731
        %v1880 = vunpack.c.l.b16 %v1732
        %v1881 = vunpack.c.l.b16 %v1733
        %v1882 = vunpack.c.l.b16 %v1734
        %v1883 = vunpack.c.l.b16 %v1735
        %v1884 = vunpack.c.l.b16 %v1736
        %v1885 = vunpack.c.l.b16 %v1737
        %v1886 = vunpack.c.l.b16 %v1738
        %v1887 = vunpack.c.l.b16 %v1739
        %v1888 = vunpack.c.l.b16 %v1740
        %v1889 = vunpack.c.l.b16 %v1741
        %v1890 = vunpack.c.l.b16 %v1742
        %v1891 = vunpack.c.l.b16 %v1743
        %v1892 = vunpack.c.l.b16 %v1744
        %v1893 = vunpack.c.l.b16 %v1745
        %v1894 = vunpack.c.l.b16 %v1746
        %v1895 = vunpack.c.l.b16 %v1747
        %v1896 = vunpack.c.l.b16 %v1748
        %v1897 = vunpack.c.l.b16 %v1749
        %v1898 = vunpack.c.l.b16 %v1750
        %v1899 = vunpack.c.l.b16 %v1751
        %v1900 = vunpack.c.l.b16 %v1752
        %v1901 = vunpack.c.l.b16 %v1753
        %v1902 = vunpack.c.l.b16 %v1754
        %v1903 = vunpack.c.l.b16 %v1755
        %v1904 = vunpack.c.l.b16 %v1756
        %v1905 = vunpack.c.l.b16 %v1757
        %v1906 = vunpack.c.l.b16 %v1758
        %v1907 = vunpack.c.l.b16 %v1759
        %v1908 = vunpack.c.l.b16 %v1760
        %v1909 = vunpack.c.l.b16 %v1761
        %v1910 = vunpack.c.l.b16 %v1762
        %v1911 = vunpack.c.l.b16 %v1763
        %v1912 = vunpack.c.l.b16 %v1764
        %v1913 = vunpack.c.l.b16 %v1765
        %v1914 = vunpack.c.l.b16 %v1766
        %v1915 = vunpack.c.l.b16 %v1767
        %v1916 = vunpack.c.l.b16 %v1768
        %v1917 = vunpack.c.l.b16 %v1769
        %v1918 = vunpack.c.l.b16 %v1770
        %v1919 = vunpack.c.l.b16 %v1771
        %v1920 = vunpack.c.l.b16 %v1772
        %v1921 = vunpack.c.l.b16 %v1773
        %v1922 = vunpack.c.l.b16 %v1774
        %v1923 = vunpack.c.l.b16 %v1775
        %v1924 = vunpack.c.l.b16 %v1776
        %v1925 = vpack.c.b16 %v1866, %v1865
        %v1926 = vpack.c.b16 %v1868, %v1867
        %v1927 = vpack.c.b16 %v1870, %v1869
        %v1928 = vpack.c.b16 %v1872, %v1871
        %v1929 = vpack.c.b16 %v1874, %v1873
        %v1930 = vpack.c.b16 %v1876, %v1875
        %v1931 = vpack.c.b16 %v1878, %v1877
        %v1932 = vpack.c.b16 %v1880, %v1879
        %v1933 = vpack.c.b16 %v1882, %v1881
        %v1934 = vpack.c.b16 %v1884, %v1883
        %v1935 = vpack.c.b16 %v1886, %v1885
        %v1936 = vpack.c.b16 %v1888, %v1887
        %v1937 = vpack.c.b16 %v1890, %v1889
        %v1938 = vpack.c.b16 %v1892, %v1891
        %v1939 = vpack.c.b16 %v1894, %v1893
        %v1940 = vpack.c.b16 %v1896, %v1895
        %v1941 = vpack.c.b16 %v1898, %v1897
        %v1942 = vpack.c.b16 %v1900, %v1899
        %v1943 = vpack.c.b16 %v1902, %v1901
        %v1944 = vpack.c.b16 %v1904, %v1903
        %v1945 = vpack.c.b16 %v1906, %v1905
        %v1946 = vpack.c.b16 %v1908, %v1907
        %v1947 = vpack.c.b16 %v1910, %v1909
        %v1948 = vpack.c.b16 %v1912, %v1911
        %v1949 = vpack.c.b16 %v1914, %v1913
        %v1950 = vpack.c.b16 %v1916, %v1915
        %v1951 = vpack.c.b16 %v1918, %v1917
        %v1952 = vpack.c.b16 %v1920, %v1919
        %v1953 = vpack.c.b16 %v1922, %v1921
        %v1954 = vpack.c.b16 %v1924, %v1923
        %v1986 = vsel %vm603, %v1780, 0
        %v1989 = vsel %vm603, %v1784, 0
        %v1992 = vsel %vm603, %v1788, 0
        %v1995 = vsel %vm603, %v1792, 0
        %1997 = vmatprep.subr.bf16.mxu0 0
        %1998 = vmatpush1.bf16.msra.mxu0 %v1932
        %1999 = vmatprep.subr.bf16.mxu0 0
        %2000 = vmatpush1.bf16.msra.mxu0 %v1931
        %2001 = vmatprep.subr.bf16.mxu0 0
        %2002 = vmatpush1.bf16.msra.mxu0 %v1930
        %2003 = vmatprep.subr.bf16.mxu0 0
        %2004 = vmatpush1.bf16.msra.mxu0 %v1929
        %2005 = vmatprep.subr.bf16.mxu0 0
        %2006 = vmatpush1.bf16.msra.mxu0 %v1928
        %2007 = vmatprep.subr.bf16.mxu0 0
        %2008 = vmatpush1.bf16.msra.mxu0 %v1927
        %2009 = vmatprep.subr.bf16.mxu0 0
        %2010 = vmatpush1.bf16.msra.mxu0 %v1926
        %2011 = vmatprep.subr.bf16.mxu0 0
        %2012 = vmatpush1.bf16.msra.mxu0 %v1925
        %2013 = vmatprep.subr.bf16.mxu0 0
        %2014 = vmatpush2.bf16.msra.mxu0 %v1940
        %2015 = vmatprep.subr.bf16.mxu0 0
        %2016 = vmatpush2.bf16.msra.mxu0 %v1939
        %2017 = vmatprep.subr.bf16.mxu0 0
        %2018 = vmatpush2.bf16.msra.mxu0 %v1938
        %2019 = vmatprep.subr.bf16.mxu0 0
        %2020 = vmatpush2.bf16.msra.mxu0 %v1937
        %2021 = vmatprep.subr.bf16.mxu0 0
        %2022 = vmatpush2.bf16.msra.mxu0 %v1936
        %2023 = vmatprep.subr.bf16.mxu0 0
        %2024 = vmatpush2.bf16.msra.mxu0 %v1935
        %2025 = vmatprep.subr.bf16.mxu0 0
        %2026 = vmatpush2.bf16.msra.mxu0 %v1934
        %2027 = vmatprep.subr.bf16.mxu0 0
        %2028 = vmatpush2.bf16.msra.mxu0 %v1933
        %2029 = vmatprep.mubr.bf16.mxu0 %v1778
        %2030 = vmatmul.mubr.bf16.gmra.mxu0 %v1777
        %v2031 = vpop.f32.mrf.mxu0
        %v2032 = vadd.f32 0.0, %v2031
        %v2033 = vpop.f32.mrf.mxu0
        %v2034 = vpop.f32.mrf.mxu0
        %v2035 = vadd.f32 0.0, %v2034
        %v2036 = vpop.f32.mrf.mxu0
        %2037 = vmatprep.mubr.bf16.mxu0 %v1782
        %2038 = vmatmul.mubr.bf16.gmra.mxu0 %v1781
        %v2039 = vpop.f32.mrf.mxu0
        %v2040 = vadd.f32 0.0, %v2039
        %v2041 = vpop.f32.mrf.mxu0
        %v2042 = vpop.f32.mrf.mxu0
        %v2043 = vadd.f32 0.0, %v2042
        %v2044 = vpop.f32.mrf.mxu0
        %2045 = vmatprep.mubr.bf16.mxu0 %v1786
        %2046 = vmatmul.mubr.bf16.gmra.mxu0 %v1785
        %v2047 = vpop.f32.mrf.mxu0
        %v2048 = vadd.f32 0.0, %v2047
        %v2049 = vpop.f32.mrf.mxu0
        %v2050 = vpop.f32.mrf.mxu0
        %v2051 = vadd.f32 0.0, %v2050
        %v2052 = vpop.f32.mrf.mxu0
        %2053 = vmatprep.mubr.bf16.mxu0 %v1790
        %2054 = vmatmul.mubr.bf16.gmra.mxu0 %v1789
        %v2055 = vpop.f32.mrf.mxu0
        %v2056 = vadd.f32 0.0, %v2055
        %v2057 = vpop.f32.mrf.mxu0
        %v2058 = vpop.f32.mrf.mxu0
        %v2059 = vadd.f32 0.0, %v2058
        %v2060 = vpop.f32.mrf.mxu0
        %2061 = vdwg.mxu0
        %2062 = vmatprep.subr.bf16.mxu0 0
        %2063 = vmatpush1.bf16.msra.mxu0 %v1948
        %2064 = vmatprep.subr.bf16.mxu0 0
        %2065 = vmatpush1.bf16.msra.mxu0 %v1947
        %2066 = vmatprep.subr.bf16.mxu0 0
        %2067 = vmatpush1.bf16.msra.mxu0 %v1946
        %2068 = vmatprep.subr.bf16.mxu0 0
        %2069 = vmatpush1.bf16.msra.mxu0 %v1945
        %2070 = vmatprep.subr.bf16.mxu0 0
        %2071 = vmatpush1.bf16.msra.mxu0 %v1944
        %2072 = vmatprep.subr.bf16.mxu0 0
        %2073 = vmatpush1.bf16.msra.mxu0 %v1943
        %2074 = vmatprep.subr.bf16.mxu0 0
        %2075 = vmatpush1.bf16.msra.mxu0 %v1942
        %2076 = vmatprep.subr.bf16.mxu0 0
        %2077 = vmatpush1.bf16.msra.mxu0 %v1941
        %2078 = vmatprep.subr.bf16.mxu0 0
        %2079 = vmatpush2.bf16.msra.mxu0 0
        %2080 = vmatprep.subr.bf16.mxu0 0
        %2081 = vmatpush2.bf16.msra.mxu0 0
        %2082 = vmatprep.subr.bf16.mxu0 0
        %2083 = vmatpush2.bf16.msra.mxu0 %v1954
        %2084 = vmatprep.subr.bf16.mxu0 0
        %2085 = vmatpush2.bf16.msra.mxu0 %v1953
        %2086 = vmatprep.subr.bf16.mxu0 0
        %2087 = vmatpush2.bf16.msra.mxu0 %v1952
        %2088 = vmatprep.subr.bf16.mxu0 0
        %2089 = vmatpush2.bf16.msra.mxu0 %v1951
        %2090 = vmatprep.subr.bf16.mxu0 0
        %2091 = vmatpush2.bf16.msra.mxu0 %v1950
        %2092 = vmatprep.subr.bf16.mxu0 0
        %2093 = vmatpush2.bf16.msra.mxu0 %v1949
        %2094 = vmatprep.mubr.bf16.mxu0 %v1986
        %2095 = vmatmul.mubr.bf16.gmra.mxu0 %v1779
        %v2096 = vpop.f32.mrf.mxu0
        %v2097 = vadd.f32 %v2032, %v2096
        %v2098 = vpop.f32.mrf.mxu0
        %v2099 = vpop.f32.mrf.mxu0
        %v2100 = vadd.f32 %v2035, %v2099
        %v2101 = vpop.f32.mrf.mxu0
        %2102 = vmatprep.mubr.bf16.mxu0 %v1989
        %2103 = vmatmul.mubr.bf16.gmra.mxu0 %v1783
        %v2104 = vpop.f32.mrf.mxu0
        %v2105 = vadd.f32 %v2040, %v2104
        %v2106 = vpop.f32.mrf.mxu0
        %v2107 = vpop.f32.mrf.mxu0
        %v2108 = vadd.f32 %v2043, %v2107
        %v2109 = vpop.f32.mrf.mxu0
        %2110 = vmatprep.mubr.bf16.mxu0 %v1992
        %2111 = vmatmul.mubr.bf16.gmra.mxu0 %v1787
        %v2112 = vpop.f32.mrf.mxu0
        %v2113 = vadd.f32 %v2048, %v2112
        %v2114 = vpop.f32.mrf.mxu0
        %v2115 = vpop.f32.mrf.mxu0
        %v2116 = vadd.f32 %v2051, %v2115
        %v2117 = vpop.f32.mrf.mxu0
        %2118 = vmatprep.mubr.bf16.mxu0 %v1995
        %2119 = vmatmul.mubr.bf16.gmra.mxu0 %v1791
        %v2120 = vpop.f32.mrf.mxu0
        %v2121 = vadd.f32 %v2056, %v2120
        %v2122 = vpop.f32.mrf.mxu0
        %v2123 = vpop.f32.mrf.mxu0
        %v2124 = vadd.f32 %v2059, %v2123
        %v2125 = vpop.f32.mrf.mxu0
        %2126 = vdwg.mxu0
        %2135 = vrot.lane.b32.xlu0 %v2097, 64
        %v2136 = vpop.permute.xlu0 %2135
        %2137 = vrot.lane.b32.xlu0 %v2100, 64
        %v2138 = vpop.permute.xlu0 %2137
        %2139 = vrot.lane.b32.xlu0 %v2105, 64
        %v2140 = vpop.permute.xlu0 %2139
        %2141 = vrot.lane.b32.xlu0 %v2108, 64
        %v2142 = vpop.permute.xlu0 %2141
        %2143 = vrot.lane.b32.xlu0 %v2113, 64
        %v2144 = vpop.permute.xlu0 %2143
        %2145 = vrot.lane.b32.xlu0 %v2116, 64
        %v2146 = vpop.permute.xlu0 %2145
        %2147 = vrot.lane.b32.xlu0 %v2121, 64
        %v2148 = vpop.permute.xlu0 %2147
        %2149 = vrot.lane.b32.xlu0 %v2124, 64
        %v2150 = vpop.permute.xlu0 %2149
        %v2159 = vmax.f32 %v2097, %v2136
        %v2160 = vmax.f32 %v2100, %v2138
        %v2161 = vmax.f32 %v2105, %v2140
        %v2162 = vmax.f32 %v2108, %v2142
        %v2163 = vmax.f32 %v2113, %v2144
        %v2164 = vmax.f32 %v2116, %v2146
        %v2165 = vmax.f32 %v2121, %v2148
        %v2166 = vmax.f32 %v2124, %v2150
        %v2167 = vld [vmem:[%s7] sm:$0x1]
        %v2169 = vlaneseq
        %v2170 = vshrl.u32 %v2169, 7
        %v2171 = vsub.s32 0, %v2170
        %v2172 = vrot.slane %v2167, %v2171
        %v2174 = vadd.f32 %v2159, %v2172
        %v2175 = vadd.f32 %v2160, %v2172
        %v2176 = vadd.f32 %v2161, %v2172
        %v2177 = vadd.f32 %v2162, %v2172
        %v2178 = vadd.f32 %v2163, %v2172
        %v2179 = vadd.f32 %v2164, %v2172
        %v2180 = vadd.f32 %v2165, %v2172
        %v2181 = vadd.f32 %v2166, %v2172
        %v2182 = vmax.f32 %v2174, 0.0
        %v2183 = vmax.f32 %v2175, 0.0
        %v2184 = vmax.f32 %v2176, 0.0
        %v2185 = vmax.f32 %v2177, 0.0
        %v2186 = vmax.f32 %v2178, 0.0
        %v2187 = vmax.f32 %v2179, 0.0
        %v2188 = vmax.f32 %v2180, 0.0
        %v2189 = vmax.f32 %v2181, 0.0
        %2190 = vst.msk [vmem:[#allocation2] sm:$0xff] %vm586, %v2182
        %2191 = vst.msk [vmem:[#allocation2 + $0x8] sm:$0xff] %vm586, %v2183
        %2192 = vst.msk [vmem:[#allocation2 + $0x10] sm:$0xff] %vm586, %v2184
        %2193 = vst.msk [vmem:[#allocation2 + $0x18] sm:$0xff] %vm586, %v2185
        %2194 = vst.msk [vmem:[#allocation2 + $0x20] sm:$0xff] %vm586, %v2186
        %2195 = vst.msk [vmem:[#allocation2 + $0x28] sm:$0xff] %vm586, %v2187
        %2196 = vst.msk [vmem:[#allocation2 + $0x30] sm:$0xff] %vm586, %v2188
        %2197 = vst.msk [vmem:[#allocation2 + $0x38] sm:$0xff] %vm586, %v2189
        %v2198 = vld [vmem:[#allocation2] sm:$0x1]
        %v2199 = vld [vmem:[#allocation2 + $0x8] sm:$0x1]
        %v2200 = vld [vmem:[#allocation2 + $0x10] sm:$0x1]
        %v2201 = vld [vmem:[#allocation2 + $0x18] sm:$0x1]
        %v2202 = vld [vmem:[#allocation2 + $0x20] sm:$0x1]
        %v2203 = vld [vmem:[#allocation2 + $0x28] sm:$0x1]
        %v2204 = vld [vmem:[#allocation2 + $0x30] sm:$0x1]
        %v2205 = vld [vmem:[#allocation2 + $0x38] sm:$0x1]
        %v2206 = vld [vmem:[#allocation2 + $0x1] sm:$0x1]
        %v2207 = vld [vmem:[#allocation2 + $0x9] sm:$0x1]
        %v2208 = vld [vmem:[#allocation2 + $0x11] sm:$0x1]
        %v2209 = vld [vmem:[#allocation2 + $0x19] sm:$0x1]
        %v2210 = vld [vmem:[#allocation2 + $0x21] sm:$0x1]
        %v2211 = vld [vmem:[#allocation2 + $0x29] sm:$0x1]
        %v2212 = vld [vmem:[#allocation2 + $0x31] sm:$0x1]
        %v2213 = vld [vmem:[#allocation2 + $0x39] sm:$0x1]
        %v2214 = vmax.f32 %v2198, %v2206
        %v2215 = vmax.f32 %v2199, %v2207
        %v2216 = vmax.f32 %v2200, %v2208
        %v2217 = vmax.f32 %v2201, %v2209
        %v2218 = vmax.f32 %v2202, %v2210
        %v2219 = vmax.f32 %v2203, %v2211
        %v2220 = vmax.f32 %v2204, %v2212
        %v2221 = vmax.f32 %v2205, %v2213
        %v2222 = vld [vmem:[#allocation2 + $0x2] sm:$0x1]
        %v2223 = vld [vmem:[#allocation2 + $0xa] sm:$0x1]
        %v2224 = vld [vmem:[#allocation2 + $0x12] sm:$0x1]
        %v2225 = vld [vmem:[#allocation2 + $0x1a] sm:$0x1]
        %v2226 = vld [vmem:[#allocation2 + $0x22] sm:$0x1]
        %v2227 = vld [vmem:[#allocation2 + $0x2a] sm:$0x1]
        %v2228 = vld [vmem:[#allocation2 + $0x32] sm:$0x1]
        %v2229 = vld [vmem:[#allocation2 + $0x3a] sm:$0x1]
        %v2230 = vld [vmem:[#allocation2 + $0x3] sm:$0x1]
        %v2231 = vld [vmem:[#allocation2 + $0xb] sm:$0x1]
        %v2232 = vld [vmem:[#allocation2 + $0x13] sm:$0x1]
        %v2233 = vld [vmem:[#allocation2 + $0x1b] sm:$0x1]
        %v2234 = vld [vmem:[#allocation2 + $0x23] sm:$0x1]
        %v2235 = vld [vmem:[#allocation2 + $0x2b] sm:$0x1]
        %v2236 = vld [vmem:[#allocation2 + $0x33] sm:$0x1]
        %v2237 = vld [vmem:[#allocation2 + $0x3b] sm:$0x1]
        %v2238 = vmax.f32 %v2222, %v2230
        %v2239 = vmax.f32 %v2223, %v2231
        %v2240 = vmax.f32 %v2224, %v2232
        %v2241 = vmax.f32 %v2225, %v2233
        %v2242 = vmax.f32 %v2226, %v2234
        %v2243 = vmax.f32 %v2227, %v2235
        %v2244 = vmax.f32 %v2228, %v2236
        %v2245 = vmax.f32 %v2229, %v2237
        %v2246 = vld [vmem:[#allocation2 + $0x4] sm:$0x1]
        %v2247 = vld [vmem:[#allocation2 + $0xc] sm:$0x1]
        %v2248 = vld [vmem:[#allocation2 + $0x14] sm:$0x1]
        %v2249 = vld [vmem:[#allocation2 + $0x1c] sm:$0x1]
        %v2250 = vld [vmem:[#allocation2 + $0x24] sm:$0x1]
        %v2251 = vld [vmem:[#allocation2 + $0x2c] sm:$0x1]
        %v2252 = vld [vmem:[#allocation2 + $0x34] sm:$0x1]
        %v2253 = vld [vmem:[#allocation2 + $0x3c] sm:$0x1]
        %v2254 = vld [vmem:[#allocation2 + $0x5] sm:$0x1]
        %v2255 = vld [vmem:[#allocation2 + $0xd] sm:$0x1]
        %v2256 = vld [vmem:[#allocation2 + $0x15] sm:$0x1]
        %v2257 = vld [vmem:[#allocation2 + $0x1d] sm:$0x1]
        %v2258 = vld [vmem:[#allocation2 + $0x25] sm:$0x1]
        %v2259 = vld [vmem:[#allocation2 + $0x2d] sm:$0x1]
        %v2260 = vld [vmem:[#allocation2 + $0x35] sm:$0x1]
        %v2261 = vld [vmem:[#allocation2 + $0x3d] sm:$0x1]
        %v2262 = vmax.f32 %v2246, %v2254
        %v2263 = vmax.f32 %v2247, %v2255
        %v2264 = vmax.f32 %v2248, %v2256
        %v2265 = vmax.f32 %v2249, %v2257
        %v2266 = vmax.f32 %v2250, %v2258
        %v2267 = vmax.f32 %v2251, %v2259
        %v2268 = vmax.f32 %v2252, %v2260
        %v2269 = vmax.f32 %v2253, %v2261
        %v2270 = vld [vmem:[#allocation2 + $0x6] sm:$0x1]
        %v2271 = vld [vmem:[#allocation2 + $0xe] sm:$0x1]
        %v2272 = vld [vmem:[#allocation2 + $0x16] sm:$0x1]
        %v2273 = vld [vmem:[#allocation2 + $0x1e] sm:$0x1]
        %v2274 = vld [vmem:[#allocation2 + $0x26] sm:$0x1]
        %v2275 = vld [vmem:[#allocation2 + $0x2e] sm:$0x1]
        %v2276 = vld [vmem:[#allocation2 + $0x36] sm:$0x1]
        %v2277 = vld [vmem:[#allocation2 + $0x3e] sm:$0x1]
        %v2278 = vld [vmem:[#allocation2 + $0x7] sm:$0x1]
        %v2279 = vld [vmem:[#allocation2 + $0xf] sm:$0x1]
        %v2280 = vld [vmem:[#allocation2 + $0x17] sm:$0x1]
        %v2281 = vld [vmem:[#allocation2 + $0x1f] sm:$0x1]
        %v2282 = vld [vmem:[#allocation2 + $0x27] sm:$0x1]
        %v2283 = vld [vmem:[#allocation2 + $0x2f] sm:$0x1]
        %v2284 = vld [vmem:[#allocation2 + $0x37] sm:$0x1]
        %v2285 = vld [vmem:[#allocation2 + $0x3f] sm:$0x1]
        %v2286 = vmax.f32 %v2270, %v2278
        %v2287 = vmax.f32 %v2271, %v2279
        %v2288 = vmax.f32 %v2272, %v2280
        %v2289 = vmax.f32 %v2273, %v2281
        %v2290 = vmax.f32 %v2274, %v2282
        %v2291 = vmax.f32 %v2275, %v2283
        %v2292 = vmax.f32 %v2276, %v2284
        %v2293 = vmax.f32 %v2277, %v2285
        %v2302 = vrot.slane %v2215, 7
        %vm2303 = vcmask 1041409
        %v2304 = vsel %vm2303, %v2302, %v2214
        %v2305 = vrot.slane %v2216, 6
        %vm2306 = vcmask 1042434
        %v2307 = vsel %vm2306, %v2305, %v2304
        %v2308 = vrot.slane %v2217, 5
        %vm2309 = vcmask 1043459
        %v2310 = vsel %vm2309, %v2308, %v2307
        %v2311 = vrot.slane %v2218, 4
        %vm2312 = vcmask 1044484
        %v2313 = vsel %vm2312, %v2311, %v2310
        %v2314 = vrot.slane %v2219, 3
        %vm2315 = vcmask 1045509
        %v2316 = vsel %vm2315, %v2314, %v2313
        %v2317 = vrot.slane %v2220, 2
        %vm2318 = vcmask 1046534
        %v2319 = vsel %vm2318, %v2317, %v2316
        %v2320 = vrot.slane %v2221, 1
        %vm2321 = vcmask 1047559
        %v2322 = vsel %vm2321, %v2320, %v2319
        %v2332 = vrot.slane %v2239, 7
        %v2333 = vsel %vm2303, %v2332, %v2238
        %v2334 = vrot.slane %v2240, 6
        %v2335 = vsel %vm2306, %v2334, %v2333
        %v2336 = vrot.slane %v2241, 5
        %v2337 = vsel %vm2309, %v2336, %v2335
        %v2338 = vrot.slane %v2242, 4
        %v2339 = vsel %vm2312, %v2338, %v2337
        %v2340 = vrot.slane %v2243, 3
        %v2341 = vsel %vm2315, %v2340, %v2339
        %v2342 = vrot.slane %v2244, 2
        %v2343 = vsel %vm2318, %v2342, %v2341
        %v2344 = vrot.slane %v2245, 1
        %v2345 = vsel %vm2321, %v2344, %v2343
        %2346 = vrot.lane.b32.xlu0 %v2345, 64
        %v2347 = vpop.permute.xlu0 %2346
        %v2357 = vrot.slane %v2263, 7
        %v2358 = vsel %vm2303, %v2357, %v2262
        %v2359 = vrot.slane %v2264, 6
        %v2360 = vsel %vm2306, %v2359, %v2358
        %v2361 = vrot.slane %v2265, 5
        %v2362 = vsel %vm2309, %v2361, %v2360
        %v2363 = vrot.slane %v2266, 4
        %v2364 = vsel %vm2312, %v2363, %v2362
        %v2365 = vrot.slane %v2267, 3
        %v2366 = vsel %vm2315, %v2365, %v2364
        %v2367 = vrot.slane %v2268, 2
        %v2368 = vsel %vm2318, %v2367, %v2366
        %v2369 = vrot.slane %v2269, 1
        %v2370 = vsel %vm2321, %v2369, %v2368
        %v2380 = vrot.slane %v2287, 7
        %v2381 = vsel %vm2303, %v2380, %v2286
        %v2382 = vrot.slane %v2288, 6
        %v2383 = vsel %vm2306, %v2382, %v2381
        %v2384 = vrot.slane %v2289, 5
        %v2385 = vsel %vm2309, %v2384, %v2383
        %v2386 = vrot.slane %v2290, 4
        %v2387 = vsel %vm2312, %v2386, %v2385
        %v2388 = vrot.slane %v2291, 3
        %v2389 = vsel %vm2315, %v2388, %v2387
        %v2390 = vrot.slane %v2292, 2
        %v2391 = vsel %vm2318, %v2390, %v2389
        %v2392 = vrot.slane %v2293, 1
        %v2393 = vsel %vm2321, %v2392, %v2391
        %2394 = vrot.lane.b32.xlu0 %v2393, 64
        %v2395 = vpop.permute.xlu0 %2394
        %v2397 = vsel %vm586, %v2322, %v2347
        %v2398 = vsel %vm586, %v2370, %v2395
        %v2399 = vpack.c.bf16 %v2397, %v2397
        %v2400 = vpack.c.bf16 %v2398, %v2398
        %v2401 = vld [vmem:[%s3] sm:$0xf]
        %v2402 = vld [vmem:[%s3 + $0x4] sm:$0xf]
        %v2403 = vld [vmem:[%s3 + $0x8] sm:$0xf]
        %v2404 = vld [vmem:[%s3 + $0xc] sm:$0xf]
        %v2405 = vld [vmem:[%s3 + $0x10] sm:$0xf]
        %v2406 = vld [vmem:[%s3 + $0x14] sm:$0xf]
        %v2407 = vld [vmem:[%s3 + $0x18] sm:$0xf]
        %v2408 = vld [vmem:[%s3 + $0x1c] sm:$0xf]
        %v2409 = vld [vmem:[%s3 + $0x20] sm:$0xf]
        %v2410 = vld [vmem:[%s3 + $0x24] sm:$0xf]
        %v2411 = vld [vmem:[%s3 + $0x28] sm:$0xf]
        %v2412 = vld [vmem:[%s3 + $0x2c] sm:$0xf]
        %v2413 = vld [vmem:[%s3 + $0x30] sm:$0xf]
        %v2414 = vld [vmem:[%s3 + $0x34] sm:$0xf]
        %v2415 = vld [vmem:[%s3 + $0x38] sm:$0xf]
        %v2416 = vld [vmem:[%s3 + $0x3c] sm:$0xf]
        %v2417 = vld [vmem:[%s3 + $0x40] sm:$0xf]
        %v2418 = vld [vmem:[%s3 + $0x44] sm:$0xf]
        %v2419 = vld [vmem:[%s3 + $0x48] sm:$0xf]
        %v2420 = vld [vmem:[%s3 + $0x4c] sm:$0xf]
        %v2421 = vld [vmem:[%s3 + $0x50] sm:$0xf]
        %v2422 = vld [vmem:[%s3 + $0x54] sm:$0xf]
        %v2423 = vld [vmem:[%s3 + $0x58] sm:$0xf]
        %v2424 = vld [vmem:[%s3 + $0x5c] sm:$0xf]
        %v2425 = vld [vmem:[%s3 + $0x60] sm:$0xf]
        %v2426 = vld [vmem:[%s3 + $0x64] sm:$0xf]
        %v2427 = vld [vmem:[%s3 + $0x68] sm:$0xf]
        %v2428 = vld [vmem:[%s3 + $0x6c] sm:$0xf]
        %v2429 = vld [vmem:[%s3 + $0x70] sm:$0xf]
        %v2430 = vld [vmem:[%s3 + $0x74] sm:$0xf]
        %v2431 = vld [vmem:[%s3 + $0x78] sm:$0xf]
        %v2432 = vld [vmem:[%s3 + $0x7c] sm:$0xf]
        %v2433 = vld [vmem:[%s8] sm:$0x1]
        %v2435 = vlaneseq
        %v2436 = vshrl.u32 %v2435, 7
        %v2437 = vsub.s32 0, %v2436
        %v2438 = vrot.slane %v2433, %v2437
        %v2472 = vunpack.c.l.b16 %v2401
        %v2473 = vunpack.c.l.b16 %v2402
        %v2474 = vunpack.c.l.b16 %v2403
        %v2475 = vunpack.c.l.b16 %v2404
        %v2476 = vunpack.c.l.b16 %v2405
        %v2477 = vunpack.c.l.b16 %v2406
        %v2478 = vunpack.c.l.b16 %v2407
        %v2479 = vunpack.c.l.b16 %v2408
        %v2480 = vunpack.c.l.b16 %v2409
        %v2481 = vunpack.c.l.b16 %v2410
        %v2482 = vunpack.c.l.b16 %v2411
        %v2483 = vunpack.c.l.b16 %v2412
        %v2484 = vunpack.c.l.b16 %v2413
        %v2485 = vunpack.c.l.b16 %v2414
        %v2486 = vunpack.c.l.b16 %v2415
        %v2487 = vunpack.c.l.b16 %v2416
        %v2488 = vunpack.c.l.b16 %v2417
        %v2489 = vunpack.c.l.b16 %v2418
        %v2490 = vunpack.c.l.b16 %v2419
        %v2491 = vunpack.c.l.b16 %v2420
        %v2492 = vunpack.c.l.b16 %v2421
        %v2493 = vunpack.c.l.b16 %v2422
        %v2494 = vunpack.c.l.b16 %v2423
        %v2495 = vunpack.c.l.b16 %v2424
        %v2496 = vunpack.c.l.b16 %v2425
        %v2497 = vunpack.c.l.b16 %v2426
        %v2498 = vunpack.c.l.b16 %v2427
        %v2499 = vunpack.c.l.b16 %v2428
        %v2500 = vunpack.c.l.b16 %v2429
        %v2501 = vunpack.c.l.b16 %v2430
        %v2502 = vunpack.c.l.b16 %v2431
        %v2503 = vunpack.c.l.b16 %v2432
        %v2504 = vpack.c.b16 %v2473, %v2472
        %v2505 = vpack.c.b16 %v2475, %v2474
        %v2506 = vpack.c.b16 %v2477, %v2476
        %v2507 = vpack.c.b16 %v2479, %v2478
        %v2508 = vpack.c.b16 %v2481, %v2480
        %v2509 = vpack.c.b16 %v2483, %v2482
        %v2510 = vpack.c.b16 %v2485, %v2484
        %v2511 = vpack.c.b16 %v2487, %v2486
        %v2512 = vpack.c.b16 %v2489, %v2488
        %v2513 = vpack.c.b16 %v2491, %v2490
        %v2514 = vpack.c.b16 %v2493, %v2492
        %v2515 = vpack.c.b16 %v2495, %v2494
        %v2516 = vpack.c.b16 %v2497, %v2496
        %v2517 = vpack.c.b16 %v2499, %v2498
        %v2518 = vpack.c.b16 %v2501, %v2500
        %v2519 = vpack.c.b16 %v2503, %v2502
        %2536 = vmatprep.subr.bf16.mxu0 0
        %2537 = vmatpush1.bf16.msra.mxu0 %v2511
        %2538 = vmatprep.subr.bf16.mxu0 0
        %2539 = vmatpush1.bf16.msra.mxu0 %v2510
        %2540 = vmatprep.subr.bf16.mxu0 0
        %2541 = vmatpush1.bf16.msra.mxu0 %v2509
        %2542 = vmatprep.subr.bf16.mxu0 0
        %2543 = vmatpush1.bf16.msra.mxu0 %v2508
        %2544 = vmatprep.subr.bf16.mxu0 0
        %2545 = vmatpush1.bf16.msra.mxu0 %v2507
        %2546 = vmatprep.subr.bf16.mxu0 0
        %2547 = vmatpush1.bf16.msra.mxu0 %v2506
        %2548 = vmatprep.subr.bf16.mxu0 0
        %2549 = vmatpush1.bf16.msra.mxu0 %v2505
        %2550 = vmatprep.subr.bf16.mxu0 0
        %2551 = vmatpush1.bf16.msra.mxu0 %v2504
        %2552 = vmatprep.subr.bf16.mxu0 0
        %2553 = vmatpush2.bf16.msra.mxu0 %v2519
        %2554 = vmatprep.subr.bf16.mxu0 0
        %2555 = vmatpush2.bf16.msra.mxu0 %v2518
        %2556 = vmatprep.subr.bf16.mxu0 0
        %2557 = vmatpush2.bf16.msra.mxu0 %v2517
        %2558 = vmatprep.subr.bf16.mxu0 0
        %2559 = vmatpush2.bf16.msra.mxu0 %v2516
        %2560 = vmatprep.subr.bf16.mxu0 0
        %2561 = vmatpush2.bf16.msra.mxu0 %v2515
        %2562 = vmatprep.subr.bf16.mxu0 0
        %2563 = vmatpush2.bf16.msra.mxu0 %v2514
        %2564 = vmatprep.subr.bf16.mxu0 0
        %2565 = vmatpush2.bf16.msra.mxu0 %v2513
        %2566 = vmatprep.subr.bf16.mxu0 0
        %2567 = vmatpush2.bf16.msra.mxu0 %v2512
        %2568 = vmatprep.mubr.bf16.mxu0 %v2400
        %2569 = vmatmul.mubr.bf16.gmra.mxu0 %v2399
        %v2570 = vpop.f32.mrf.mxu0
        %v2571 = vadd.f32 %v2438, %v2570
        %v2572 = vpop.f32.mrf.mxu0
        %v2573 = vpop.f32.mrf.mxu0
        %v2574 = vpop.f32.mrf.mxu0
        %2575 = vdwg.mxu0
        %v2576 = vmax.f32 %v2571, 0.0
        %v2577 = vpack.c.bf16 %v2576, %v2576
        %v2578 = vld [vmem:[%s4] sm:$0xf]
        %v2579 = vld [vmem:[%s4 + $0x4] sm:$0xf]
        %v2580 = vld [vmem:[%s4 + $0x8] sm:$0xf]
        %v2581 = vld [vmem:[%s4 + $0xc] sm:$0xf]
        %v2582 = vld [vmem:[%s4 + $0x10] sm:$0xf]
        %v2583 = vld [vmem:[%s4 + $0x14] sm:$0xf]
        %v2584 = vld [vmem:[%s4 + $0x18] sm:$0xf]
        %v2585 = vld [vmem:[%s4 + $0x1c] sm:$0xf]
        %v2586 = vld [vmem:[%s4 + $0x20] sm:$0xf]
        %v2587 = vld [vmem:[%s4 + $0x24] sm:$0xf]
        %v2588 = vld [vmem:[%s4 + $0x28] sm:$0xf]
        %v2589 = vld [vmem:[%s4 + $0x2c] sm:$0xf]
        %v2590 = vld [vmem:[%s4 + $0x30] sm:$0xf]
        %v2591 = vld [vmem:[%s4 + $0x34] sm:$0xf]
        %v2592 = vld [vmem:[%s4 + $0x38] sm:$0xf]
        %v2593 = vld [vmem:[%s4 + $0x3c] sm:$0xf]
        %v2594 = vld [vmem:[%s9] sm:$0x1]
        %v2596 = vlaneseq
        %v2597 = vshrl.u32 %v2596, 7
        %v2598 = vsub.s32 0, %v2597
        %v2599 = vrot.slane %v2594, %v2598
        %v2617 = vunpack.c.l.b16 %v2578
        %v2618 = vunpack.c.l.b16 %v2579
        %v2619 = vunpack.c.l.b16 %v2580
        %v2620 = vunpack.c.l.b16 %v2581
        %v2621 = vunpack.c.l.b16 %v2582
        %v2622 = vunpack.c.l.b16 %v2583
        %v2623 = vunpack.c.l.b16 %v2584
        %v2624 = vunpack.c.l.b16 %v2585
        %v2625 = vunpack.c.l.b16 %v2586
        %v2626 = vunpack.c.l.b16 %v2587
        %v2627 = vunpack.c.l.b16 %v2588
        %v2628 = vunpack.c.l.b16 %v2589
        %v2629 = vunpack.c.l.b16 %v2590
        %v2630 = vunpack.c.l.b16 %v2591
        %v2631 = vunpack.c.l.b16 %v2592
        %v2632 = vunpack.c.l.b16 %v2593
        %v2633 = vpack.c.b16 %v2618, %v2617
        %v2634 = vpack.c.b16 %v2620, %v2619
        %v2635 = vpack.c.b16 %v2622, %v2621
        %v2636 = vpack.c.b16 %v2624, %v2623
        %v2637 = vpack.c.b16 %v2626, %v2625
        %v2638 = vpack.c.b16 %v2628, %v2627
        %v2639 = vpack.c.b16 %v2630, %v2629
        %v2640 = vpack.c.b16 %v2632, %v2631
        %2649 = vmatprep.subr.bf16.mxu0 0
        %2650 = vmatpush1.bf16.msra.mxu0 %v2640
        %2651 = vmatprep.subr.bf16.mxu0 0
        %2652 = vmatpush1.bf16.msra.mxu0 %v2639
        %2653 = vmatprep.subr.bf16.mxu0 0
        %2654 = vmatpush1.bf16.msra.mxu0 %v2638
        %2655 = vmatprep.subr.bf16.mxu0 0
        %2656 = vmatpush1.bf16.msra.mxu0 %v2637
        %2657 = vmatprep.subr.bf16.mxu0 0
        %2658 = vmatpush1.bf16.msra.mxu0 %v2636
        %2659 = vmatprep.subr.bf16.mxu0 0
        %2660 = vmatpush1.bf16.msra.mxu0 %v2635
        %2661 = vmatprep.subr.bf16.mxu0 0
        %2662 = vmatpush1.bf16.msra.mxu0 %v2634
        %2663 = vmatprep.subr.bf16.mxu0 0
        %2664 = vmatpush1.bf16.msra.mxu0 %v2633
        %2665 = vmatprep.subr.bf16.mxu0 0
        %2666 = vmatpush2.bf16.msra.mxu0 0
        %2667 = vmatprep.subr.bf16.mxu0 0
        %2668 = vmatpush2.bf16.msra.mxu0 0
        %2669 = vmatprep.subr.bf16.mxu0 0
        %2670 = vmatpush2.bf16.msra.mxu0 0
        %2671 = vmatprep.subr.bf16.mxu0 0
        %2672 = vmatpush2.bf16.msra.mxu0 0
        %2673 = vmatprep.subr.bf16.mxu0 0
        %2674 = vmatpush2.bf16.msra.mxu0 0
        %2675 = vmatprep.subr.bf16.mxu0 0
        %2676 = vmatpush2.bf16.msra.mxu0 0
        %2677 = vmatprep.subr.bf16.mxu0 0
        %2678 = vmatpush2.bf16.msra.mxu0 0
        %2679 = vmatprep.subr.bf16.mxu0 0
        %2680 = vmatpush2.bf16.msra.mxu0 0
        %2681 = vmatprep.mubr.bf16.mxu0 0
        %2682 = vmatmul.mubr.bf16.gmra.mxu0 %v2577
        %v2683 = vpop.f32.mrf.mxu0
        %v2684 = vadd.f32 %v2599, %v2683
        %v2685 = vpop.f32.mrf.mxu0
        %v2686 = vpop.f32.mrf.mxu0
        %v2687 = vpop.f32.mrf.mxu0
        %2688 = vdwg.mxu0
        %v2689 = vmax.f32 %v2684, 0.0
        %v2690 = vpack.c.bf16 %v2689, %v2689
        %v2691 = vld [vmem:[%s5] sm:$0xf]
        %v2692 = vld [vmem:[%s5 + $0x4] sm:$0xf]
        %v2693 = vld [vmem:[%s5 + $0x8] sm:$0xf]
        %v2694 = vld [vmem:[%s5 + $0xc] sm:$0xf]
        %v2695 = vld [vmem:[%s5 + $0x10] sm:$0xf]
        %v2696 = vld [vmem:[%s5 + $0x14] sm:$0xf]
        %v2697 = vld [vmem:[%s5 + $0x18] sm:$0xf]
        %v2698 = vld [vmem:[%s5 + $0x1c] sm:$0xf]
        %v2699 = vld [vmem:[%s5 + $0x20] sm:$0xf]
        %v2700 = vld [vmem:[%s5 + $0x24] sm:$0xf]
        %v2701 = vld [vmem:[%s5 + $0x28] sm:$0xf]
        %v2702 = vld [vmem:[%s5 + $0x2c] sm:$0xf]
        %v2703 = vld [vmem:[%s5 + $0x30] sm:$0xf]
        %v2704 = vld [vmem:[%s5 + $0x34] sm:$0xf]
        %v2705 = vld [vmem:[%s5 + $0x38] sm:$0xf]
        %v2706 = vld [vmem:[%s5 + $0x3c] sm:$0xf]
        %v2707 = vld [vmem:[%s10] sm:$0x1]
        %v2709 = vlaneseq
        %v2710 = vshrl.u32 %v2709, 7
        %v2711 = vsub.s32 0, %v2710
        %v2712 = vrot.slane %v2707, %v2711
        %v2730 = vunpack.c.l.b16 %v2691
        %v2731 = vunpack.c.l.b16 %v2692
        %v2732 = vunpack.c.l.b16 %v2693
        %v2733 = vunpack.c.l.b16 %v2694
        %v2734 = vunpack.c.l.b16 %v2695
        %v2735 = vunpack.c.l.b16 %v2696
        %v2736 = vunpack.c.l.b16 %v2697
        %v2737 = vunpack.c.l.b16 %v2698
        %v2738 = vunpack.c.l.b16 %v2699
        %v2739 = vunpack.c.l.b16 %v2700
        %v2740 = vunpack.c.l.b16 %v2701
        %v2741 = vunpack.c.l.b16 %v2702
        %v2742 = vunpack.c.l.b16 %v2703
        %v2743 = vunpack.c.l.b16 %v2704
        %v2744 = vunpack.c.l.b16 %v2705
        %v2745 = vunpack.c.l.b16 %v2706
        %v2746 = vpack.c.b16 %v2731, %v2730
        %v2747 = vpack.c.b16 %v2733, %v2732
        %v2748 = vpack.c.b16 %v2735, %v2734
        %v2749 = vpack.c.b16 %v2737, %v2736
        %v2750 = vpack.c.b16 %v2739, %v2738
        %v2751 = vpack.c.b16 %v2741, %v2740
        %v2752 = vpack.c.b16 %v2743, %v2742
        %v2753 = vpack.c.b16 %v2745, %v2744
        %2762 = vmatprep.subr.bf16.mxu0 0
        %2763 = vmatpush1.bf16.msra.mxu0 %v2753
        %2764 = vmatprep.subr.bf16.mxu0 0
        %2765 = vmatpush1.bf16.msra.mxu0 %v2752
        %2766 = vmatprep.subr.bf16.mxu0 0
        %2767 = vmatpush1.bf16.msra.mxu0 %v2751
        %2768 = vmatprep.subr.bf16.mxu0 0
        %2769 = vmatpush1.bf16.msra.mxu0 %v2750
        %2770 = vmatprep.subr.bf16.mxu0 0
        %2771 = vmatpush1.bf16.msra.mxu0 %v2749
        %2772 = vmatprep.subr.bf16.mxu0 0
        %2773 = vmatpush1.bf16.msra.mxu0 %v2748
        %2774 = vmatprep.subr.bf16.mxu0 0
        %2775 = vmatpush1.bf16.msra.mxu0 %v2747
        %2776 = vmatprep.subr.bf16.mxu0 0
        %2777 = vmatpush1.bf16.msra.mxu0 %v2746
        %2778 = vmatprep.subr.bf16.mxu0 0
        %2779 = vmatpush2.bf16.msra.mxu0 0
        %2780 = vmatprep.subr.bf16.mxu0 0
        %2781 = vmatpush2.bf16.msra.mxu0 0
        %2782 = vmatprep.subr.bf16.mxu0 0
        %2783 = vmatpush2.bf16.msra.mxu0 0
        %2784 = vmatprep.subr.bf16.mxu0 0
        %2785 = vmatpush2.bf16.msra.mxu0 0
        %2786 = vmatprep.subr.bf16.mxu0 0
        %2787 = vmatpush2.bf16.msra.mxu0 0
        %2788 = vmatprep.subr.bf16.mxu0 0
        %2789 = vmatpush2.bf16.msra.mxu0 0
        %2790 = vmatprep.subr.bf16.mxu0 0
        %2791 = vmatpush2.bf16.msra.mxu0 0
        %2792 = vmatprep.subr.bf16.mxu0 0
        %2793 = vmatpush2.bf16.msra.mxu0 0
        %2794 = vmatprep.mubr.bf16.mxu0 0
        %2795 = vmatmul.mubr.bf16.gmra.mxu0 %v2690
        %v2796 = vpop.f32.mrf.mxu0
        %v2797 = vadd.f32 %v2712, %v2796
        %v2798 = vpop.f32.mrf.mxu0
        %v2799 = vpop.f32.mrf.mxu0
        %v2800 = vpop.f32.mrf.mxu0
        %2801 = vdwg.mxu0
        %2802 = vst [vmem:[%s382] sm:$0xff] %v2797
        %s2803 = sand.u32 %s269, 1
        %s2804 = scalar_lea.sflag [#allocation4], %s2803
        %s2805 = sand.u32 %s269, 1
        %s2806 = smul.addr %s2805, 8
        %s2807 = scalar_lea.vmem [#allocation3], %s2806
        // Predicated region
        $region65: #{lenet_forward.1} parent=63 // pred_check
          %p2808 = pneg %p279
        $region66: #{lenet_forward.1} parent=63 // pred_check_branch
          %2810 = sbr.rel (%p2808) target = $region68
        $region67: #{lenet_forward.1} parent=63 // pred_region
          %s2812 = ssub.s32 128, 128
          %2813 = vsyncadd %s2804, %s2812
          %s2814 = smul.addr %s25, 128
          %s2815 = scalar_lea.hbm %s11, %s2814
          %s2817 = sshll.u32 %s2807, 4
          %s2818 = int_to_ptr.vmem [resolvable:$true] %s2817
          %2820 = dma.vmem_to_hbm [thread:$0]  %s2818, 128, %s2815, %s2804
        $region68: #{lenet_forward.1} parent=63 // pred_fallthru
          _
      $region64: #{lenet_forward.1} parent=5 // pred_fallthru
        _
      %p2821 = scmp.le.s32.totalorder 2, %s20
      // Predicated region
      $region69: #{lenet_forward.1} parent=5 // pred_check
        %p2822 = pneg %p2821
      $region70: #{lenet_forward.1} parent=5 // pred_check_branch
        %2824 = sbr.rel (%p2822) target = $region72
      $region71: #{lenet_forward.1} parent=5 // pred_region
        %s2825 = ssub.s32 %s20, 2
        // Predicated region
        $region73: #{lenet_forward.1} parent=71 // pred_check
          %p2826 = pneg %p285
        $region74: #{lenet_forward.1} parent=71 // pred_check_branch
          %2828 = sbr.rel (%p2826) target = $region76
        $region75: #{lenet_forward.1} parent=71 // pred_region
          %s2829 = sand.u32 %s270, 1
          %s2830 = scalar_lea.sflag [#allocation4], %s2829
          %s2831 = sand.u32 %s270, 1
          %s2832 = smul.addr %s2831, 8
          %s2833 = scalar_lea.vmem [#allocation3], %s2832
          %2834 = dma.done %s2830, 128
        $region76: #{lenet_forward.1} parent=71 // pred_fallthru
          _
      $region72: #{lenet_forward.1} parent=5 // pred_fallthru
        _
    $region6: #{lenet_forward.1} parent=1 // loop_footer
      %s24 = sadd.s32 1, %s20
    $region7: #{lenet_forward.1} parent=1 // loop_footer_branch
      %19 = sbr.rel target = $region3
    $region8: #{lenet_forward.1} parent=1 // loop_exit
      _
    %2835 = vsyncpa [#allocation4], 1
    %s2836 = scalar_lea.sflag [#allocation4], 1
    %2837 = vsyncpa %s2836, 1

</llo_original>
